<compile_context>
chip_gen: v7x
topology: tpu7x:2x2x1
jax: 0.10.0
libtpu: 0.0.40
codegen_flags: <defaults>
</compile_context>

<pallas_src>
import functools
import math

import jax
import jax.numpy as jnp
from jax.experimental import pallas as pl
from jax.experimental.pallas import tpu as pltpu

EPS = 1e-5  # torch LayerNorm default


def _layer_norm(x, gamma, beta):
    # x: (N, H); gamma/beta: (1, H). Biased variance, eps inside rsqrt (torch).
    mean = jnp.mean(x, axis=-1, keepdims=True)
    var = jnp.mean((x - mean) ** 2, axis=-1, keepdims=True)
    return (x - mean) * jax.lax.rsqrt(var + EPS) * gamma + beta


# ---------------- fused kernel ----------------

def fused_transformer_kernel(
        # inputs (12)
        x_ref, w_in_ref, b_in_ref,
        wqkv_ref, bqkv_ref, wo_ref, w1_ref, b1_ref, w2_ref, vecs_ref,
        w_fc_ref, b_fc_ref,
        # output
        out_ref,
        # scratch (persists across grid steps)
        h_ref,
        *, batch, seq, num_heads, head_dim):
    """Grid = (batch_shards ["parallel"], num_layers ["arbitrary"])."""
    l = pl.program_id(1)
    last = pl.num_programs(1) - 1
    hidden = num_heads * head_dim

    # ---- input projection (first layer step of each shard); dropout = identity ----
    @pl.when(l == 0)
    def _():
        h_ref[...] = (jnp.dot(x_ref[...], w_in_ref[...],
                              preferred_element_type=jnp.float32) + b_in_ref[...])

    x = h_ref[...]                                     # (Ns, H), VMEM-resident

    vec = vecs_ref[0]                                  # (8, H) packed per-layer vectors
    bo, g1, bt1 = vec[0:1], vec[1:2], vec[2:3]
    b2, g2, bt2 = vec[3:4], vec[4:5], vec[5:6]

    # ---- multi-head self-attention ----
    # One lane-dense QKV matmul; 1/sqrt(head_dim) already folded into q columns.
    qkv = (jnp.dot(x, wqkv_ref[0], preferred_element_type=jnp.float32)
           + bqkv_ref[0])                              # (Ns, 3H)
    q3 = qkv[:, :hidden].reshape(batch, seq, hidden)
    k3 = qkv[:, hidden:2 * hidden].reshape(batch, seq, hidden)
    v3 = qkv[:, 2 * hidden:].reshape(batch, seq, hidden)

    head_outs = []
    for h in range(num_heads):                         # static unroll; lane slices only
        sl = slice(h * head_dim, (h + 1) * head_dim)
        qh, kh, vh = q3[:, :, sl], k3[:, :, sl], v3[:, :, sl]
        s = jnp.einsum('bqd,bkd->bqk', qh, kh, preferred_element_type=jnp.float32)
        s = s - jnp.max(s, axis=-1, keepdims=True)
        p = jnp.exp(s)
        p = p / jnp.sum(p, axis=-1, keepdims=True)     # exact softmax normalization
        head_outs.append(jnp.einsum('bqk,bkd->bqd', p, vh,
                                    preferred_element_type=jnp.float32))
    # merge heads back onto lanes, then one (H, H) output projection
    ao = jnp.concatenate(head_outs, axis=-1).reshape(batch * seq, hidden)   # (Ns, H)
    attn = jnp.dot(ao, wo_ref[0], preferred_element_type=jnp.float32) + bo

    # Residual + LayerNorm 1 (post-norm); dropout = identity.
    y = _layer_norm(x + attn, g1, bt1)

    # Feed-forward H -> 2H -> H with ReLU.
    h1 = jnp.maximum(jnp.dot(y, w1_ref[0], preferred_element_type=jnp.float32)
                     + b1_ref[0], 0.0)
    h2 = jnp.dot(h1, w2_ref[0], preferred_element_type=jnp.float32) + b2

    # Residual + LayerNorm 2; write back to the resident activation scratch.
    h_ref[...] = _layer_norm(y + h2, g2, bt2)

    # ---- mean-pool over seq + classifier (last layer step only) ----
    @pl.when(l == last)
    def _():
        pooled = jnp.mean(h_ref[...].reshape(batch, seq, hidden), axis=1)   # (Bs, H)
        out_ref[...] = (jnp.dot(pooled, w_fc_ref[...],
                                preferred_element_type=jnp.float32) + b_fc_ref[...])


# ---------------- wrapper ----------------

def transformer_forward(x, params, *, num_heads, batch_shards=1):
    B, S, Din = x.shape
    H = params['w_in'].shape[1]
    C = params['w_fc'].shape[1]
    hd = H // num_heads
    L = len(params['layers'])
    N = B * S

    assert B % batch_shards == 0
    Bs = B // batch_shards
    Ns = Bs * S
    if batch_shards > 1:
        # sub-full blocks need sublane-aligned row counts
        assert Bs % 8 == 0, "batch_shards > 1 requires (B // batch_shards) % 8 == 0"

    # --- weight prep (pure layout / one-time scaling, outside the kernel) ---
    scale = 1.0 / math.sqrt(hd)
    col_scale = jnp.concatenate([jnp.full((H,), scale, jnp.float32),
                                 jnp.ones((2 * H,), jnp.float32)])

    def stack(key):
        return jnp.stack([lyr[key] for lyr in params['layers']])

    wqkv_s = stack('wqkv') * col_scale[None, None, :]        # (L, H, 3H), q cols scaled
    bqkv_s = stack('bqkv') * col_scale[None, None, :]        # (L, 1, 3H)
    wo_s = stack('wo')                                       # (L, H, H)
    w1_s, b1_s = stack('w1'), stack('b1')                    # (L, H, 2H), (L, 1, 2H)
    w2_s = stack('w2')                                       # (L, 2H, H)
    # pack the six per-layer (1, H) vectors into one (L, 8, H) slab (one DMA per step)
    vecs_s = jnp.concatenate(
        [stack('bo'), stack('g1'), stack('bt1'),
         stack('b2'), stack('g2'), stack('bt2'),
         jnp.zeros((L, 2, H), jnp.float32)], axis=1)         # (L, 8, H)

    def fixed(shape):                       # same (whole-array) block every step
        nd = len(shape)
        return pl.BlockSpec(shape, lambda b, l, _nd=nd: (0,) * _nd)

    def per_layer(shape):                   # pick layer l's weight slab
        nd = len(shape)
        return pl.BlockSpec((1,) + shape, lambda b, l, _nd=nd: (l,) + (0,) * _nd)

    in_specs = [
        pl.BlockSpec((Ns, Din), lambda b, l: (b, 0)),        # x (flattened outside)
        fixed((Din, H)), fixed((1, H)),                      # w_in, b_in
        per_layer((H, 3 * H)), per_layer((1, 3 * H)),        # wqkv, bqkv
        per_layer((H, H)),                                   # wo
        per_layer((H, 2 * H)), per_layer((1, 2 * H)),        # w1, b1
        per_layer((2 * H, H)),                               # w2
        per_layer((8, H)),                                   # packed per-layer vectors
        fixed((H, C)), fixed((1, C)),                        # w_fc, b_fc
    ]

    # --- VMEM budget: resident activation + double-buffered per-layer slab + fixed
    #     inputs + attention/FFN intermediates, with headroom, capped at chip VMEM. ---
    f32b = 4
    per_layer_bytes = f32b * (3 * H * H + 3 * H + H * H + 2 * H * H + 2 * H
                              + 2 * H * H + 8 * H)
    fixed_bytes = f32b * (Ns * Din + Din * H + H + H * C + C + Bs * C)
    scratch_bytes = f32b * Ns * H
    inter_bytes = f32b * (Ns * 3 * H + num_heads * Bs * S * S + Ns * 2 * H + 4 * Ns * H)
    try:
        cap = int(0.9 * pltpu.get_tpu_info().vmem_capacity_bytes)
    except Exception:
        cap = 100 * 2 ** 20
    vmem_limit = int(min(cap, max(32 * 2 ** 20,
                                  int(1.5 * (scratch_bytes + 2 * per_layer_bytes
                                             + 2 * fixed_bytes + inter_bytes)))))

    # Advisory cost estimate for XLA scheduling around the single custom call.
    flops = (2 * N * Din * H + 2 * B * H * C
             + L * (2 * N * H * 3 * H                        # qkv projection
                    + 2 * 2 * B * num_heads * S * S * hd     # scores + values
                    + 2 * N * H * H                          # output projection
                    + 2 * 2 * N * H * 2 * H))                # FFN
    transcendentals = L * B * num_heads * S * S
    bytes_accessed = f32b * (N * Din + Din * H + H + H * C + C + B * C
                             + L * (8 * H * H + 16 * H))

    grid_spec = pltpu.PrefetchScalarGridSpec(
        num_scalar_prefetch=0,
        grid=(batch_shards, L),
        in_specs=in_specs,
        out_specs=pl.BlockSpec((Bs, C), lambda b, l: (b, 0)),
        scratch_shapes=[pltpu.VMEM((Ns, H), jnp.float32)],   # resident activation
    )

    return pl.pallas_call(
        functools.partial(fused_transformer_kernel, batch=Bs, seq=S,
                          num_heads=num_heads, head_dim=hd),
        out_shape=jax.ShapeDtypeStruct((B, C), jnp.float32),
        grid_spec=grid_spec,
        compiler_params=pltpu.CompilerParams(
            dimension_semantics=("parallel", "arbitrary"),   # shards || ; layers seq
            vmem_limit_bytes=vmem_limit),
        cost_estimate=pl.CostEstimate(flops=int(flops),
                                      transcendentals=int(transcendentals),
                                      bytes_accessed=int(bytes_accessed)),
    )(x.reshape(N, Din), params['w_in'], params['b_in'],
      wqkv_s, bqkv_s, wo_s, w1_s, b1_s, w2_s, vecs_s,
      params['w_fc'], params['b_fc'])


# ---------------- pure-JAX reference (for correctness check) ----------------

def reference_forward(x, params, *, num_heads):
    B, S, Din = x.shape
    H = params['w_in'].shape[1]
    hd = H // num_heads
    h = x.reshape(B * S, Din) @ params['w_in'] + params['b_in']
    for lyr in params['layers']:
        xx = h
        qkv = xx @ lyr['wqkv'] + lyr['bqkv']
        q = qkv[:, :H].reshape(B, S, num_heads, hd).transpose(0, 2, 1, 3)
        k = qkv[:, H:2 * H].reshape(B, S, num_heads, hd).transpose(0, 2, 1, 3)
        v = qkv[:, 2 * H:].reshape(B, S, num_heads, hd).transpose(0, 2, 1, 3)
        s = jnp.einsum('bhqd,bhkd->bhqk', q, k) * (1.0 / math.sqrt(hd))
        p = jax.nn.softmax(s, axis=-1)
        ao = jnp.einsum('bhqk,bhkd->bhqd', p, v).transpose(0, 2, 1, 3).reshape(B * S, H)
        attn = ao @ lyr['wo'] + lyr['bo']
        y = _layer_norm(xx + attn, lyr['g1'], lyr['bt1'])
        ff = jnp.maximum(y @ lyr['w1'] + lyr['b1'], 0.0) @ lyr['w2'] + lyr['b2']
        h = _layer_norm(y + ff, lyr['g2'], lyr['bt2'])
    pooled = h.reshape(B, S, H).mean(axis=1)
    return pooled @ params['w_fc'] + params['b_fc']


def init_params(key, input_size, hidden_size, num_layers, num_heads, num_classes):
    def dense(k, din, dout, scale=0.05):
        kw, kb = jax.random.split(k)
        w = scale * jax.random.normal(kw, (din, dout), jnp.float32)
        b = scale * jax.random.normal(kb, (1, dout), jnp.float32)
        return w, b

    keys = jax.random.split(key, 2 + num_layers)
    w_in, b_in = dense(keys[0], input_size, hidden_size)
    w_fc, b_fc = dense(keys[1], hidden_size, num_classes)

    layers = []
    for li in range(num_layers):
        lk = jax.random.split(keys[2 + li], 4)
        wqkv, bqkv = dense(lk[0], hidden_size, 3 * hidden_size)
        wo, bo = dense(lk[1], hidden_size, hidden_size)
        w1, b1 = dense(lk[2], hidden_size, 2 * hidden_size)
        w2, b2 = dense(lk[3], 2 * hidden_size, hidden_size)
        layers.append(dict(
            wqkv=wqkv, bqkv=bqkv, wo=wo, bo=bo,
            g1=jnp.ones((1, hidden_size), jnp.float32),
            bt1=jnp.zeros((1, hidden_size), jnp.float32),
            w1=w1, b1=b1, w2=w2, b2=b2,
            g2=jnp.ones((1, hidden_size), jnp.float32),
            bt2=jnp.zeros((1, hidden_size), jnp.float32),
        ))
    return dict(w_in=w_in, b_in=b_in, layers=layers, w_fc=w_fc, b_fc=b_fc)


if __name__ == "__main__":
    # small shapes consistent with the module's forward
    B, S = 2, 8
    input_size, hidden_size = 16, 32
    num_layers, num_heads, num_classes = 2, 4, 5

    key = jax.random.PRNGKey(0)
    kx, kp = jax.random.split(key)
    x = jax.random.normal(kx, (B, S, input_size), jnp.float32)
    params = init_params(kp, input_size, hidden_size, num_layers,
                         num_heads, num_classes)

    fwd = jax.jit(functools.partial(transformer_forward, num_heads=num_heads,
                                    batch_shards=1))
    out = jax.block_until_ready(fwd(x, params))
    assert out.shape == (B, num_classes), out.shape

    ref = reference_forward(x, params, num_heads=num_heads)
    assert jnp.allclose(out, ref, rtol=1e-3, atol=1e-3), (
        float(jnp.max(jnp.abs(out - ref))))
    print("KERNEL_OK")
</pallas_src>

<mosaic_0001>
module attributes {stable_mosaic.version = 11 : i64} {
  func.func @fused_transformer_kernel(%arg0: i32, %arg1: i32, %arg2: memref<16x16xf32, #tpu.memory_space<vmem>>, %arg3: memref<16x32xf32, #tpu.memory_space<vmem>>, %arg4: memref<1x32xf32, #tpu.memory_space<vmem>>, %arg5: memref<1x32x96xf32, #tpu.memory_space<vmem>>, %arg6: memref<1x1x96xf32, #tpu.memory_space<vmem>>, %arg7: memref<1x32x32xf32, #tpu.memory_space<vmem>>, %arg8: memref<1x32x64xf32, #tpu.memory_space<vmem>>, %arg9: memref<1x1x64xf32, #tpu.memory_space<vmem>>, %arg10: memref<1x64x32xf32, #tpu.memory_space<vmem>>, %arg11: memref<1x8x32xf32, #tpu.memory_space<vmem>>, %arg12: memref<32x5xf32, #tpu.memory_space<vmem>>, %arg13: memref<1x5xf32, #tpu.memory_space<vmem>>, %arg14: memref<2x5xf32, #tpu.memory_space<vmem>>, %arg15: memref<16x32xf32, #tpu.memory_space<vmem>>) attributes {dimension_semantics = [#tpu.dimension_semantics<parallel>, #tpu.dimension_semantics<arbitrary>], iteration_bounds = array<i64: 1, 2>, scalar_prefetch = 0 : i64, scratch_operands = 1 : i64, tpu.core_type = #tpu.core_type<tc>, window_params = [{transform_indices = @transform_0, window_bounds = array<i64: 16, 16>}, {pipeline_mode = #tpu.pipeline_mode<synchronous>, transform_indices = @transform_1, window_bounds = array<i64: 16, 32>}, {pipeline_mode = #tpu.pipeline_mode<synchronous>, transform_indices = @transform_2, window_bounds = array<i64: 1, 32>}, {transform_indices = @transform_3, window_bounds = array<i64: 1, 32, 96>}, {transform_indices = @transform_4, window_bounds = array<i64: 1, 1, 96>}, {transform_indices = @transform_5, window_bounds = array<i64: 1, 32, 32>}, {transform_indices = @transform_6, window_bounds = array<i64: 1, 32, 64>}, {transform_indices = @transform_7, window_bounds = array<i64: 1, 1, 64>}, {transform_indices = @transform_8, window_bounds = array<i64: 1, 64, 32>}, {transform_indices = @transform_9, window_bounds = array<i64: 1, 8, 32>}, {pipeline_mode = #tpu.pipeline_mode<synchronous>, transform_indices = @transform_10, window_bounds = array<i64: 32, 5>}, {pipeline_mode = #tpu.pipeline_mode<synchronous>, transform_indices = @transform_11, window_bounds = array<i64: 1, 5>}, {transform_indices = @transform_12, window_bounds = array<i64: 2, 5>}]} {
    %c0_i32 = arith.constant 0 : i32
    %0 = arith.cmpi eq, %arg1, %c0_i32 : i32
    %1 = arith.extui %0 : i1 to i32
    %c0_i32_0 = arith.constant 0 : i32
    %2 = arith.cmpi ne, %1, %c0_i32_0 : i32
    scf.if %2 {
      %c0_56 = arith.constant 0 : index
      %c0_57 = arith.constant 0 : index
      %152 = vector.load %arg2[%c0_56, %c0_57] : memref<16x16xf32, #tpu.memory_space<vmem>>, vector<16x16xf32>
      %c0_58 = arith.constant 0 : index
      %c0_59 = arith.constant 0 : index
      %153 = vector.load %arg3[%c0_58, %c0_59] : memref<16x32xf32, #tpu.memory_space<vmem>>, vector<16x32xf32>
      %cst_60 = arith.constant dense<0.000000e+00> : vector<16x32xf32>
      %154 = tpu.matmul %152, %153, %cst_60 {dimension_numbers = #tpu.dot_dimension_numbers<[1], [0], [0], [1], [0, 0, 1, 1], [], []>} : vector<16x16xf32>, vector<16x32xf32>, vector<16x32xf32> -> vector<16x32xf32>
      %c0_61 = arith.constant 0 : index
      %c0_62 = arith.constant 0 : index
      %155 = vector.load %arg4[%c0_61, %c0_62] : memref<1x32xf32, #tpu.memory_space<vmem>>, vector<1x32xf32>
      %156 = vector.broadcast %155 : vector<1x32xf32> to vector<16x32xf32>
      %157 = arith.addf %154, %156 : vector<16x32xf32>
      %c0_63 = arith.constant 0 : index
      %c0_64 = arith.constant 0 : index
      %158 = vector.load %arg15[%c0_63, %c0_64] : memref<16x32xf32, #tpu.memory_space<vmem>>, vector<16x32xf32>
      tpu.vector_store %arg15[%c0_63, %c0_64], %157 {strides = array<i32>} : memref<16x32xf32, #tpu.memory_space<vmem>>, vector<16x32xf32>,
    } else {
    }
    %c0 = arith.constant 0 : index
    %c0_1 = arith.constant 0 : index
    %3 = vector.load %arg15[%c0, %c0_1] : memref<16x32xf32, #tpu.memory_space<vmem>>, vector<16x32xf32>
    %c0_2 = arith.constant 0 : index
    %c0_3 = arith.constant 0 : index
    %c0_4 = arith.constant 0 : index
    %4 = vector.load %arg11[%c0_2, %c0_3, %c0_4] : memref<1x8x32xf32, #tpu.memory_space<vmem>>, vector<1x8x32xf32>
    %5 = vector.shape_cast %4 : vector<1x8x32xf32> to vector<8x32xf32>
    %6 = vector.extract_strided_slice %5 {offsets = [0, 0], sizes = [1, 32], strides = [1, 1]} : vector<8x32xf32> to vector<1x32xf32>
    %7 = vector.extract_strided_slice %5 {offsets = [1, 0], sizes = [1, 32], strides = [1, 1]} : vector<8x32xf32> to vector<1x32xf32>
    %8 = vector.extract_strided_slice %5 {offsets = [2, 0], sizes = [1, 32], strides = [1, 1]} : vector<8x32xf32> to vector<1x32xf32>
    %9 = vector.extract_strided_slice %5 {offsets = [3, 0], sizes = [1, 32], strides = [1, 1]} : vector<8x32xf32> to vector<1x32xf32>
    %10 = vector.extract_strided_slice %5 {offsets = [4, 0], sizes = [1, 32], strides = [1, 1]} : vector<8x32xf32> to vector<1x32xf32>
    %11 = vector.extract_strided_slice %5 {offsets = [5, 0], sizes = [1, 32], strides = [1, 1]} : vector<8x32xf32> to vector<1x32xf32>
    %c0_5 = arith.constant 0 : index
    %c0_6 = arith.constant 0 : index
    %c0_7 = arith.constant 0 : index
    %12 = vector.load %arg5[%c0_5, %c0_6, %c0_7] : memref<1x32x96xf32, #tpu.memory_space<vmem>>, vector<1x32x96xf32>
    %13 = vector.shape_cast %12 : vector<1x32x96xf32> to vector<32x96xf32>
    %cst = arith.constant dense<0.000000e+00> : vector<16x96xf32>
    %14 = tpu.matmul %3, %13, %cst {dimension_numbers = #tpu.dot_dimension_numbers<[1], [0], [0], [1], [0, 0, 1, 1], [], []>} : vector<16x32xf32>, vector<32x96xf32>, vector<16x96xf32> -> vector<16x96xf32>
    %c0_8 = arith.constant 0 : index
    %c0_9 = arith.constant 0 : index
    %c0_10 = arith.constant 0 : index
    %15 = vector.load %arg6[%c0_8, %c0_9, %c0_10] : memref<1x1x96xf32, #tpu.memory_space<vmem>>, vector<1x1x96xf32>
    %16 = vector.shape_cast %15 : vector<1x1x96xf32> to vector<1x96xf32>
    %17 = vector.broadcast %16 : vector<1x96xf32> to vector<16x96xf32>
    %18 = arith.addf %14, %17 : vector<16x96xf32>
    %19 = vector.extract_strided_slice %18 {offsets = [0, 0], sizes = [16, 32], strides = [1, 1]} : vector<16x96xf32> to vector<16x32xf32>
    %20 = vector.shape_cast %19 : vector<16x32xf32> to vector<2x8x32xf32>
    %21 = vector.extract_strided_slice %18 {offsets = [0, 32], sizes = [16, 32], strides = [1, 1]} : vector<16x96xf32> to vector<16x32xf32>
    %22 = vector.shape_cast %21 : vector<16x32xf32> to vector<2x8x32xf32>
    %23 = vector.extract_strided_slice %18 {offsets = [0, 64], sizes = [16, 32], strides = [1, 1]} : vector<16x96xf32> to vector<16x32xf32>
    %24 = vector.shape_cast %23 : vector<16x32xf32> to vector<2x8x32xf32>
    %25 = vector.extract_strided_slice %20 {offsets = [0, 0, 0], sizes = [2, 8, 8], strides = [1, 1, 1]} : vector<2x8x32xf32> to vector<2x8x8xf32>
    %26 = vector.extract_strided_slice %22 {offsets = [0, 0, 0], sizes = [2, 8, 8], strides = [1, 1, 1]} : vector<2x8x32xf32> to vector<2x8x8xf32>
    %27 = vector.extract_strided_slice %24 {offsets = [0, 0, 0], sizes = [2, 8, 8], strides = [1, 1, 1]} : vector<2x8x32xf32> to vector<2x8x8xf32>
    "tpu.trace_start"() <{level = 10 : i32, message = "bqd,bkd->bqk"}> : () -> ()
    %cst_11 = arith.constant dense<0.000000e+00> : vector<2x8x8xf32>
    %28 = tpu.matmul %25, %26, %cst_11 {dimension_numbers = #tpu.dot_dimension_numbers<[2], [2], [1], [1], [0, 0, 0, 1, 1, 1], [0], [0]>} : vector<2x8x8xf32>, vector<2x8x8xf32>, vector<2x8x8xf32> -> vector<2x8x8xf32>
    "tpu.trace_stop"() : () -> ()
    %cst_12 = arith.constant dense<0xFF800000> : vector<2x8xf32>
    %29 = vector.multi_reduction <maximumf>, %28, %cst_12 [2] : vector<2x8x8xf32> to vector<2x8xf32>
    %30 = vector.shape_cast %29 : vector<2x8xf32> to vector<2x8x1xf32>
    %31 = vector.broadcast %30 : vector<2x8x1xf32> to vector<2x8x8xf32>
    %32 = arith.subf %28, %31 : vector<2x8x8xf32>
    %33 = math.exp %32 : vector<2x8x8xf32>
    %cst_13 = arith.constant dense<0.000000e+00> : vector<2x8xf32>
    %34 = vector.multi_reduction <add>, %33, %cst_13 [2] : vector<2x8x8xf32> to vector<2x8xf32>
    %35 = vector.shape_cast %34 : vector<2x8xf32> to vector<2x8x1xf32>
    %36 = vector.broadcast %35 : vector<2x8x1xf32> to vector<2x8x8xf32>
    %37 = arith.divf %33, %36 : vector<2x8x8xf32>
    "tpu.trace_start"() <{level = 10 : i32, message = "bqk,bkd->bqd"}> : () -> ()
    %cst_14 = arith.constant dense<0.000000e+00> : vector<2x8x8xf32>
    %38 = tpu.matmul %37, %27, %cst_14 {dimension_numbers = #tpu.dot_dimension_numbers<[2], [1], [1], [2], [0, 0, 0, 1, 1, 2], [0], [0]>} : vector<2x8x8xf32>, vector<2x8x8xf32>, vector<2x8x8xf32> -> vector<2x8x8xf32>
    "tpu.trace_stop"() : () -> ()
    %39 = vector.extract_strided_slice %20 {offsets = [0, 0, 8], sizes = [2, 8, 8], strides = [1, 1, 1]} : vector<2x8x32xf32> to vector<2x8x8xf32>
    %40 = vector.extract_strided_slice %22 {offsets = [0, 0, 8], sizes = [2, 8, 8], strides = [1, 1, 1]} : vector<2x8x32xf32> to vector<2x8x8xf32>
    %41 = vector.extract_strided_slice %24 {offsets = [0, 0, 8], sizes = [2, 8, 8], strides = [1, 1, 1]} : vector<2x8x32xf32> to vector<2x8x8xf32>
    "tpu.trace_start"() <{level = 10 : i32, message = "bqd,bkd->bqk"}> : () -> ()
    %cst_15 = arith.constant dense<0.000000e+00> : vector<2x8x8xf32>
    %42 = tpu.matmul %39, %40, %cst_15 {dimension_numbers = #tpu.dot_dimension_numbers<[2], [2], [1], [1], [0, 0, 0, 1, 1, 1], [0], [0]>} : vector<2x8x8xf32>, vector<2x8x8xf32>, vector<2x8x8xf32> -> vector<2x8x8xf32>
    "tpu.trace_stop"() : () -> ()
    %cst_16 = arith.constant dense<0xFF800000> : vector<2x8xf32>
    %43 = vector.multi_reduction <maximumf>, %42, %cst_16 [2] : vector<2x8x8xf32> to vector<2x8xf32>
    %44 = vector.shape_cast %43 : vector<2x8xf32> to vector<2x8x1xf32>
    %45 = vector.broadcast %44 : vector<2x8x1xf32> to vector<2x8x8xf32>
    %46 = arith.subf %42, %45 : vector<2x8x8xf32>
    %47 = math.exp %46 : vector<2x8x8xf32>
    %cst_17 = arith.constant dense<0.000000e+00> : vector<2x8xf32>
    %48 = vector.multi_reduction <add>, %47, %cst_17 [2] : vector<2x8x8xf32> to vector<2x8xf32>
    %49 = vector.shape_cast %48 : vector<2x8xf32> to vector<2x8x1xf32>
    %50 = vector.broadcast %49 : vector<2x8x1xf32> to vector<2x8x8xf32>
    %51 = arith.divf %47, %50 : vector<2x8x8xf32>
    "tpu.trace_start"() <{level = 10 : i32, message = "bqk,bkd->bqd"}> : () -> ()
    %cst_18 = arith.constant dense<0.000000e+00> : vector<2x8x8xf32>
    %52 = tpu.matmul %51, %41, %cst_18 {dimension_numbers = #tpu.dot_dimension_numbers<[2], [1], [1], [2], [0, 0, 0, 1, 1, 2], [0], [0]>} : vector<2x8x8xf32>, vector<2x8x8xf32>, vector<2x8x8xf32> -> vector<2x8x8xf32>
    "tpu.trace_stop"() : () -> ()
    %53 = vector.extract_strided_slice %20 {offsets = [0, 0, 16], sizes = [2, 8, 8], strides = [1, 1, 1]} : vector<2x8x32xf32> to vector<2x8x8xf32>
    %54 = vector.extract_strided_slice %22 {offsets = [0, 0, 16], sizes = [2, 8, 8], strides = [1, 1, 1]} : vector<2x8x32xf32> to vector<2x8x8xf32>
    %55 = vector.extract_strided_slice %24 {offsets = [0, 0, 16], sizes = [2, 8, 8], strides = [1, 1, 1]} : vector<2x8x32xf32> to vector<2x8x8xf32>
    "tpu.trace_start"() <{level = 10 : i32, message = "bqd,bkd->bqk"}> : () -> ()
    %cst_19 = arith.constant dense<0.000000e+00> : vector<2x8x8xf32>
    %56 = tpu.matmul %53, %54, %cst_19 {dimension_numbers = #tpu.dot_dimension_numbers<[2], [2], [1], [1], [0, 0, 0, 1, 1, 1], [0], [0]>} : vector<2x8x8xf32>, vector<2x8x8xf32>, vector<2x8x8xf32> -> vector<2x8x8xf32>
    "tpu.trace_stop"() : () -> ()
    %cst_20 = arith.constant dense<0xFF800000> : vector<2x8xf32>
    %57 = vector.multi_reduction <maximumf>, %56, %cst_20 [2] : vector<2x8x8xf32> to vector<2x8xf32>
    %58 = vector.shape_cast %57 : vector<2x8xf32> to vector<2x8x1xf32>
    %59 = vector.broadcast %58 : vector<2x8x1xf32> to vector<2x8x8xf32>
    %60 = arith.subf %56, %59 : vector<2x8x8xf32>
    %61 = math.exp %60 : vector<2x8x8xf32>
    %cst_21 = arith.constant dense<0.000000e+00> : vector<2x8xf32>
    %62 = vector.multi_reduction <add>, %61, %cst_21 [2] : vector<2x8x8xf32> to vector<2x8xf32>
    %63 = vector.shape_cast %62 : vector<2x8xf32> to vector<2x8x1xf32>
    %64 = vector.broadcast %63 : vector<2x8x1xf32> to vector<2x8x8xf32>
    %65 = arith.divf %61, %64 : vector<2x8x8xf32>
    "tpu.trace_start"() <{level = 10 : i32, message = "bqk,bkd->bqd"}> : () -> ()
    %cst_22 = arith.constant dense<0.000000e+00> : vector<2x8x8xf32>
    %66 = tpu.matmul %65, %55, %cst_22 {dimension_numbers = #tpu.dot_dimension_numbers<[2], [1], [1], [2], [0, 0, 0, 1, 1, 2], [0], [0]>} : vector<2x8x8xf32>, vector<2x8x8xf32>, vector<2x8x8xf32> -> vector<2x8x8xf32>
    "tpu.trace_stop"() : () -> ()
    %67 = vector.extract_strided_slice %20 {offsets = [0, 0, 24], sizes = [2, 8, 8], strides = [1, 1, 1]} : vector<2x8x32xf32> to vector<2x8x8xf32>
    %68 = vector.extract_strided_slice %22 {offsets = [0, 0, 24], sizes = [2, 8, 8], strides = [1, 1, 1]} : vector<2x8x32xf32> to vector<2x8x8xf32>
    %69 = vector.extract_strided_slice %24 {offsets = [0, 0, 24], sizes = [2, 8, 8], strides = [1, 1, 1]} : vector<2x8x32xf32> to vector<2x8x8xf32>
    "tpu.trace_start"() <{level = 10 : i32, message = "bqd,bkd->bqk"}> : () -> ()
    %cst_23 = arith.constant dense<0.000000e+00> : vector<2x8x8xf32>
    %70 = tpu.matmul %67, %68, %cst_23 {dimension_numbers = #tpu.dot_dimension_numbers<[2], [2], [1], [1], [0, 0, 0, 1, 1, 1], [0], [0]>} : vector<2x8x8xf32>, vector<2x8x8xf32>, vector<2x8x8xf32> -> vector<2x8x8xf32>
    "tpu.trace_stop"() : () -> ()
    %cst_24 = arith.constant dense<0xFF800000> : vector<2x8xf32>
    %71 = vector.multi_reduction <maximumf>, %70, %cst_24 [2] : vector<2x8x8xf32> to vector<2x8xf32>
    %72 = vector.shape_cast %71 : vector<2x8xf32> to vector<2x8x1xf32>
    %73 = vector.broadcast %72 : vector<2x8x1xf32> to vector<2x8x8xf32>
    %74 = arith.subf %70, %73 : vector<2x8x8xf32>
    %75 = math.exp %74 : vector<2x8x8xf32>
    %cst_25 = arith.constant dense<0.000000e+00> : vector<2x8xf32>
    %76 = vector.multi_reduction <add>, %75, %cst_25 [2] : vector<2x8x8xf32> to vector<2x8xf32>
    %77 = vector.shape_cast %76 : vector<2x8xf32> to vector<2x8x1xf32>
    %78 = vector.broadcast %77 : vector<2x8x1xf32> to vector<2x8x8xf32>
    %79 = arith.divf %75, %78 : vector<2x8x8xf32>
    "tpu.trace_start"() <{level = 10 : i32, message = "bqk,bkd->bqd"}> : () -> ()
    %cst_26 = arith.constant dense<0.000000e+00> : vector<2x8x8xf32>
    %80 = tpu.matmul %79, %69, %cst_26 {dimension_numbers = #tpu.dot_dimension_numbers<[2], [1], [1], [2], [0, 0, 0, 1, 1, 2], [0], [0]>} : vector<2x8x8xf32>, vector<2x8x8xf32>, vector<2x8x8xf32> -> vector<2x8x8xf32>
    "tpu.trace_stop"() : () -> ()
    %81 = tpu.concatenate %38, %52, %66, %80 in 2 : vector<2x8x8xf32>, vector<2x8x8xf32>, vector<2x8x8xf32>, vector<2x8x8xf32> -> vector<2x8x32xf32>
    %82 = vector.shape_cast %81 : vector<2x8x32xf32> to vector<16x32xf32>
    %c0_27 = arith.constant 0 : index
    %c0_28 = arith.constant 0 : index
    %c0_29 = arith.constant 0 : index
    %83 = vector.load %arg7[%c0_27, %c0_28, %c0_29] : memref<1x32x32xf32, #tpu.memory_space<vmem>>, vector<1x32x32xf32>
    %84 = vector.shape_cast %83 : vector<1x32x32xf32> to vector<32x32xf32>
    %cst_30 = arith.constant dense<0.000000e+00> : vector<16x32xf32>
    %85 = tpu.matmul %82, %84, %cst_30 {dimension_numbers = #tpu.dot_dimension_numbers<[1], [0], [0], [1], [0, 0, 1, 1], [], []>} : vector<16x32xf32>, vector<32x32xf32>, vector<16x32xf32> -> vector<16x32xf32>
    %86 = vector.broadcast %6 : vector<1x32xf32> to vector<16x32xf32>
    %87 = arith.addf %85, %86 : vector<16x32xf32>
    %88 = arith.addf %3, %87 : vector<16x32xf32>
    %cst_31 = arith.constant dense<0.000000e+00> : vector<16xf32>
    %89 = vector.multi_reduction <add>, %88, %cst_31 [1] : vector<16x32xf32> to vector<16xf32>
    %90 = vector.shape_cast %89 : vector<16xf32> to vector<16x1xf32>
    %cst_32 = arith.constant 3.200000e+01 : f32
    %91 = vector.broadcast %cst_32 : f32 to vector<16x1xf32>
    %92 = arith.divf %90, %91 : vector<16x1xf32>
    %93 = vector.broadcast %92 : vector<16x1xf32> to vector<16x32xf32>
    %94 = arith.subf %88, %93 : vector<16x32xf32>
    %95 = arith.mulf %94, %94 : vector<16x32xf32>
    %cst_33 = arith.constant dense<0.000000e+00> : vector<16xf32>
    %96 = vector.multi_reduction <add>, %95, %cst_33 [1] : vector<16x32xf32> to vector<16xf32>
    %97 = vector.shape_cast %96 : vector<16xf32> to vector<16x1xf32>
    %cst_34 = arith.constant 3.200000e+01 : f32
    %98 = vector.broadcast %cst_34 : f32 to vector<16x1xf32>
    %99 = arith.divf %97, %98 : vector<16x1xf32>
    %100 = vector.broadcast %92 : vector<16x1xf32> to vector<16x32xf32>
    %101 = arith.subf %88, %100 : vector<16x32xf32>
    %cst_35 = arith.constant 9.99999974E-6 : f32
    %102 = vector.broadcast %cst_35 : f32 to vector<16x1xf32>
    %103 = arith.addf %99, %102 : vector<16x1xf32>
    %104 = math.rsqrt %103 : vector<16x1xf32>
    %105 = vector.broadcast %104 : vector<16x1xf32> to vector<16x32xf32>
    %106 = arith.mulf %101, %105 : vector<16x32xf32>
    %107 = vector.broadcast %7 : vector<1x32xf32> to vector<16x32xf32>
    %108 = arith.mulf %106, %107 : vector<16x32xf32>
    %109 = vector.broadcast %8 : vector<1x32xf32> to vector<16x32xf32>
    %110 = arith.addf %108, %109 : vector<16x32xf32>
    %c0_36 = arith.constant 0 : index
    %c0_37 = arith.constant 0 : index
    %c0_38 = arith.constant 0 : index
    %111 = vector.load %arg8[%c0_36, %c0_37, %c0_38] : memref<1x32x64xf32, #tpu.memory_space<vmem>>, vector<1x32x64xf32>
    %112 = vector.shape_cast %111 : vector<1x32x64xf32> to vector<32x64xf32>
    %cst_39 = arith.constant dense<0.000000e+00> : vector<16x64xf32>
    %113 = tpu.matmul %110, %112, %cst_39 {dimension_numbers = #tpu.dot_dimension_numbers<[1], [0], [0], [1], [0, 0, 1, 1], [], []>} : vector<16x32xf32>, vector<32x64xf32>, vector<16x64xf32> -> vector<16x64xf32>
    %c0_40 = arith.constant 0 : index
    %c0_41 = arith.constant 0 : index
    %c0_42 = arith.constant 0 : index
    %114 = vector.load %arg9[%c0_40, %c0_41, %c0_42] : memref<1x1x64xf32, #tpu.memory_space<vmem>>, vector<1x1x64xf32>
    %115 = vector.shape_cast %114 : vector<1x1x64xf32> to vector<1x64xf32>
    %116 = vector.broadcast %115 : vector<1x64xf32> to vector<16x64xf32>
    %117 = arith.addf %113, %116 : vector<16x64xf32>
    %cst_43 = arith.constant 0.000000e+00 : f32
    %118 = vector.broadcast %cst_43 : f32 to vector<16x64xf32>
    %119 = arith.maximumf %117, %118 : vector<16x64xf32>
    %c0_44 = arith.constant 0 : index
    %c0_45 = arith.constant 0 : index
    %c0_46 = arith.constant 0 : index
    %120 = vector.load %arg10[%c0_44, %c0_45, %c0_46] : memref<1x64x32xf32, #tpu.memory_space<vmem>>, vector<1x64x32xf32>
    %121 = vector.shape_cast %120 : vector<1x64x32xf32> to vector<64x32xf32>
    %cst_47 = arith.constant dense<0.000000e+00> : vector<16x32xf32>
    %122 = tpu.matmul %119, %121, %cst_47 {dimension_numbers = #tpu.dot_dimension_numbers<[1], [0], [0], [1], [0, 0, 1, 1], [], []>} : vector<16x64xf32>, vector<64x32xf32>, vector<16x32xf32> -> vector<16x32xf32>
    %123 = vector.broadcast %9 : vector<1x32xf32> to vector<16x32xf32>
    %124 = arith.addf %122, %123 : vector<16x32xf32>
    %125 = arith.addf %110, %124 : vector<16x32xf32>
    %cst_48 = arith.constant dense<0.000000e+00> : vector<16xf32>
    %126 = vector.multi_reduction <add>, %125, %cst_48 [1] : vector<16x32xf32> to vector<16xf32>
    %127 = vector.shape_cast %126 : vector<16xf32> to vector<16x1xf32>
    %cst_49 = arith.constant 3.200000e+01 : f32
    %128 = vector.broadcast %cst_49 : f32 to vector<16x1xf32>
    %129 = arith.divf %127, %128 : vector<16x1xf32>
    %130 = vector.broadcast %129 : vector<16x1xf32> to vector<16x32xf32>
    %131 = arith.subf %125, %130 : vector<16x32xf32>
    %132 = arith.mulf %131, %131 : vector<16x32xf32>
    %cst_50 = arith.constant dense<0.000000e+00> : vector<16xf32>
    %133 = vector.multi_reduction <add>, %132, %cst_50 [1] : vector<16x32xf32> to vector<16xf32>
    %134 = vector.shape_cast %133 : vector<16xf32> to vector<16x1xf32>
    %cst_51 = arith.constant 3.200000e+01 : f32
    %135 = vector.broadcast %cst_51 : f32 to vector<16x1xf32>
    %136 = arith.divf %134, %135 : vector<16x1xf32>
    %137 = vector.broadcast %129 : vector<16x1xf32> to vector<16x32xf32>
    %138 = arith.subf %125, %137 : vector<16x32xf32>
    %cst_52 = arith.constant 9.99999974E-6 : f32
    %139 = vector.broadcast %cst_52 : f32 to vector<16x1xf32>
    %140 = arith.addf %136, %139 : vector<16x1xf32>
    %141 = math.rsqrt %140 : vector<16x1xf32>
    %142 = vector.broadcast %141 : vector<16x1xf32> to vector<16x32xf32>
    %143 = arith.mulf %138, %142 : vector<16x32xf32>
    %144 = vector.broadcast %10 : vector<1x32xf32> to vector<16x32xf32>
    %145 = arith.mulf %143, %144 : vector<16x32xf32>
    %146 = vector.broadcast %11 : vector<1x32xf32> to vector<16x32xf32>
    %147 = arith.addf %145, %146 : vector<16x32xf32>
    %c0_53 = arith.constant 0 : index
    %c0_54 = arith.constant 0 : index
    %148 = vector.load %arg15[%c0_53, %c0_54] : memref<16x32xf32, #tpu.memory_space<vmem>>, vector<16x32xf32>
    tpu.vector_store %arg15[%c0_53, %c0_54], %147 {strides = array<i32>} : memref<16x32xf32, #tpu.memory_space<vmem>>, vector<16x32xf32>,
    %c1_i32 = arith.constant 1 : i32
    %149 = arith.cmpi eq, %arg1, %c1_i32 : i32
    %150 = arith.extui %149 : i1 to i32
    %c0_i32_55 = arith.constant 0 : i32
    %151 = arith.cmpi ne, %150, %c0_i32_55 : i32
    scf.if %151 {
      %c0_56 = arith.constant 0 : index
      %c0_57 = arith.constant 0 : index
      %152 = vector.load %arg15[%c0_56, %c0_57] : memref<16x32xf32, #tpu.memory_space<vmem>>, vector<16x32xf32>
      %153 = vector.shape_cast %152 : vector<16x32xf32> to vector<2x8x32xf32>
      %cst_58 = arith.constant dense<0.000000e+00> : vector<2x32xf32>
      %154 = vector.multi_reduction <add>, %153, %cst_58 [1] : vector<2x8x32xf32> to vector<2x32xf32>
      %cst_59 = arith.constant 8.000000e+00 : f32
      %155 = vector.broadcast %cst_59 : f32 to vector<2x32xf32>
      %156 = arith.divf %154, %155 : vector<2x32xf32>
      %c0_60 = arith.constant 0 : index
      %c0_61 = arith.constant 0 : index
      %157 = vector.load %arg12[%c0_60, %c0_61] : memref<32x5xf32, #tpu.memory_space<vmem>>, vector<32x5xf32>
      %cst_62 = arith.constant dense<0.000000e+00> : vector<2x5xf32>
      %158 = tpu.matmul %156, %157, %cst_62 {dimension_numbers = #tpu.dot_dimension_numbers<[1], [0], [0], [1], [0, 0, 1, 1], [], []>} : vector<2x32xf32>, vector<32x5xf32>, vector<2x5xf32> -> vector<2x5xf32>
      %c0_63 = arith.constant 0 : index
      %c0_64 = arith.constant 0 : index
      %159 = vector.load %arg13[%c0_63, %c0_64] : memref<1x5xf32, #tpu.memory_space<vmem>>, vector<1x5xf32>
      %160 = vector.broadcast %159 : vector<1x5xf32> to vector<2x5xf32>
      %161 = arith.addf %158, %160 : vector<2x5xf32>
      %c0_65 = arith.constant 0 : index
      %c0_66 = arith.constant 0 : index
      %162 = vector.load %arg14[%c0_65, %c0_66] : memref<2x5xf32, #tpu.memory_space<vmem>>, vector<2x5xf32>
      tpu.vector_store %arg14[%c0_65, %c0_66], %161 {strides = array<i32>} : memref<2x5xf32, #tpu.memory_space<vmem>>, vector<2x5xf32>,
    } else {
    }
    return
  }
  func.func @transform_0(%arg0: i32, %arg1: i32) -> (i32, i32) {
    %c0_i32 = arith.constant 0 : i32
    %c0_i32_0 = arith.constant 0 : i32
    return %arg0, %c0_i32 : i32, i32
  }
  func.func @transform_1(%arg0: i32, %arg1: i32) -> (i32, i32) {
    %c0_i32 = arith.constant 0 : i32
    %c0_i32_0 = arith.constant 0 : i32
    %c0_i32_1 = arith.constant 0 : i32
    return %c0_i32, %c0_i32_0 : i32, i32
  }
  func.func @transform_2(%arg0: i32, %arg1: i32) -> (i32, i32) {
    %c0_i32 = arith.constant 0 : i32
    %c0_i32_0 = arith.constant 0 : i32
    %c0_i32_1 = arith.constant 0 : i32
    return %c0_i32, %c0_i32_0 : i32, i32
  }
  func.func @transform_3(%arg0: i32, %arg1: i32) -> (i32, i32, i32) {
    %c0_i32 = arith.constant 0 : i32
    %c0_i32_0 = arith.constant 0 : i32
    %c0_i32_1 = arith.constant 0 : i32
    return %arg1, %c0_i32, %c0_i32_0 : i32, i32, i32
  }
  func.func @transform_4(%arg0: i32, %arg1: i32) -> (i32, i32, i32) {
    %c0_i32 = arith.constant 0 : i32
    %c0_i32_0 = arith.constant 0 : i32
    %c0_i32_1 = arith.constant 0 : i32
    return %arg1, %c0_i32, %c0_i32_0 : i32, i32, i32
  }
  func.func @transform_5(%arg0: i32, %arg1: i32) -> (i32, i32, i32) {
    %c0_i32 = arith.constant 0 : i32
    %c0_i32_0 = arith.constant 0 : i32
    %c0_i32_1 = arith.constant 0 : i32
    return %arg1, %c0_i32, %c0_i32_0 : i32, i32, i32
  }
  func.func @transform_6(%arg0: i32, %arg1: i32) -> (i32, i32, i32) {
    %c0_i32 = arith.constant 0 : i32
    %c0_i32_0 = arith.constant 0 : i32
    %c0_i32_1 = arith.constant 0 : i32
    return %arg1, %c0_i32, %c0_i32_0 : i32, i32, i32
  }
  func.func @transform_7(%arg0: i32, %arg1: i32) -> (i32, i32, i32) {
    %c0_i32 = arith.constant 0 : i32
    %c0_i32_0 = arith.constant 0 : i32
    %c0_i32_1 = arith.constant 0 : i32
    return %arg1, %c0_i32, %c0_i32_0 : i32, i32, i32
  }
  func.func @transform_8(%arg0: i32, %arg1: i32) -> (i32, i32, i32) {
    %c0_i32 = arith.constant 0 : i32
    %c0_i32_0 = arith.constant 0 : i32
    %c0_i32_1 = arith.constant 0 : i32
    return %arg1, %c0_i32, %c0_i32_0 : i32, i32, i32
  }
  func.func @transform_9(%arg0: i32, %arg1: i32) -> (i32, i32, i32) {
    %c0_i32 = arith.constant 0 : i32
    %c0_i32_0 = arith.constant 0 : i32
    %c0_i32_1 = arith.constant 0 : i32
    return %arg1, %c0_i32, %c0_i32_0 : i32, i32, i32
  }
  func.func @transform_10(%arg0: i32, %arg1: i32) -> (i32, i32) {
    %c0_i32 = arith.constant 0 : i32
    %c0_i32_0 = arith.constant 0 : i32
    %c0_i32_1 = arith.constant 0 : i32
    return %c0_i32, %c0_i32_0 : i32, i32
  }
  func.func @transform_11(%arg0: i32, %arg1: i32) -> (i32, i32) {
    %c0_i32 = arith.constant 0 : i32
    %c0_i32_0 = arith.constant 0 : i32
    %c0_i32_1 = arith.constant 0 : i32
    return %c0_i32, %c0_i32_0 : i32, i32
  }
  func.func @transform_12(%arg0: i32, %arg1: i32) -> (i32, i32) {
    %c0_i32 = arith.constant 0 : i32
    %c0_i32_0 = arith.constant 0 : i32
    return %arg0, %c0_i32 : i32, i32
  }
}

</mosaic_0001>

<llo_original>
// kernel: transformer_forward.1
$region0: #{transformer_forward.1}
  #allocation0 [shape = 'u32[]', space=smem, size = 0x4, offset = 0x4, fixed_abs, tag = 'smem constant byte address 0x4 - core index']
  #allocation1 [shape = 'u32[144,128]{1,0:T(1,128)}', space=vmem, size = 0x12000, scoped, tag = 'internal scratch']
  #allocation2 [shape = 'f32[16,32]{1,0:T(8,128)}', space=vmem, size = 0x2000, scoped, tag = 'scratch operand']
  %s0 = inlined_call_operand.vmem [shape: f32[16,16], index: 0, kind: input, shape index: {}]
  %s1 = inlined_call_operand.vmem [shape: f32[16,32], index: 1, kind: input, shape index: {}]
  %s2 = inlined_call_operand.vmem [shape: f32[1,32], index: 2, kind: input, shape index: {}]
  %s3 = inlined_call_operand.vmem [shape: f32[2,32,96], index: 3, kind: input, shape index: {}]
  %s4 = inlined_call_operand.vmem [shape: f32[2,1,96], index: 4, kind: input, shape index: {}]
  %s5 = inlined_call_operand.vmem [shape: f32[2,32,32], index: 5, kind: input, shape index: {}]
  %s6 = inlined_call_operand.vmem [shape: f32[2,32,64], index: 6, kind: input, shape index: {}]
  %s7 = inlined_call_operand.vmem [shape: f32[2,1,64], index: 7, kind: input, shape index: {}]
  %s8 = inlined_call_operand.vmem [shape: f32[2,64,32], index: 8, kind: input, shape index: {}]
  %s9 = inlined_call_operand.vmem [shape: f32[2,8,32], index: 9, kind: input, shape index: {}]
  %s10 = inlined_call_operand.vmem [shape: f32[32,5], index: 10, kind: input, shape index: {}]
  %s11 = inlined_call_operand.vmem [shape: f32[1,5], index: 11, kind: input, shape index: {}]
  %s12 = inlined_call_operand.hbm [shape: f32[2,5], index: 12, kind: output, shape index: {}]
  %s13 = sld [smem:[#allocation0]]
  $region89: #{transformer_forward.1} parent=0
    _
  %s15 = ssub.s32 1, %s13
  %s16 = scalar_select 0, %s15, %s13
  $region1: #{transformer_forward.1} parent=0
    #allocation3 [shape = 'u8[1024]{0}', space=vmem, size = 0x400, scoped, tag = 'output window, operand 0, single buffered']
    #allocation4 [shape = 's32[2]{0}', space=sflag, size = 0x8, scoped, tag = 'scoped memory for transformer_forward.1']
    %17 = vsyncpa [#allocation4], 0
    loop: start=0, step=1, limit=4
    $region2: #{transformer_forward.1} parent=1 // loop_pre_header
      _
    $region3: #{transformer_forward.1} parent=1 // loop_header
      %s19 = sphi 0, %s23
      %p20 = scmp.ge.s32.totalorder %s19, 4
      %s26 = sphi 0, %s38
      %s27 = sphi 0, %s34
      %s28 = sphi 0, %s26
      %s29 = sphi 0, %s27
      %s30 = sphi 0, %s28
      %s31 = sphi 0, %s29
      %s41 = sphi 0, %s43
      %s44 = sphi 0, %s41
      %s45 = sphi 0, %s44
      %s61 = sphi 0, %s45
      %s65 = sphi 0, %s65
      %s67 = sphi 0, %s65
      %s68 = sphi 0, %s67
      %s82 = sphi 0, %s68
      %s86 = sphi 0, %s86
      %s88 = sphi 0, %s86
      %s89 = sphi 0, %s88
      %s103 = sphi 0, %s89
      %s109 = sphi 0, %s111
      %s112 = sphi 0, %s109
      %s113 = sphi 0, %s112
      %s129 = sphi 0, %s113
      %s135 = sphi 0, %s137
      %s138 = sphi 0, %s135
      %s139 = sphi 0, %s138
      %s155 = sphi 0, %s139
      %s161 = sphi 0, %s163
      %s164 = sphi 0, %s161
      %s165 = sphi 0, %s164
      %s181 = sphi 0, %s165
      %s187 = sphi 0, %s189
      %s190 = sphi 0, %s187
      %s191 = sphi 0, %s190
      %s207 = sphi 0, %s191
      %s213 = sphi 0, %s215
      %s216 = sphi 0, %s213
      %s217 = sphi 0, %s216
      %s233 = sphi 0, %s217
      %s239 = sphi 0, %s241
      %s242 = sphi 0, %s239
      %s243 = sphi 0, %s242
      %s259 = sphi 0, %s243
      %s265 = sphi 0, %s267
      %s268 = sphi 0, %s265
      %s269 = sphi 0, %s268
      %s285 = sphi 0, %s269
      %s289 = sphi 0, %s289
      %s291 = sphi 0, %s289
      %s292 = sphi 0, %s291
      %s306 = sphi 0, %s292
      %s310 = sphi 0, %s310
      %s312 = sphi 0, %s310
      %s313 = sphi 0, %s312
      %s327 = sphi 0, %s313
      %s333 = sphi 0, %s335
      %s336 = sphi 0, %s333
      %s337 = sphi 0, %s336
      %s353 = sphi 0, %s337
    $region4: #{transformer_forward.1} parent=1 // loop_header_branch
      %22 = sbr.rel (%p20) target = $region8
    $region5: #{transformer_forward.1} parent=1 // loop_body
      %s24 = ssub.s32 %s19, 1
      %s25 = ssub.s32 %s19, 2
      %s32 = sadd.s32 1, %s27
      %p33 = scmp.ge.s32.totalorder %s32, 2
      %s34 = scalar_select %p33, 0, %s32
      %s35 = sadd.s32 1, %s26
      %s36 = scalar_select %p33, %s35, %s26
      %p37 = scmp.ge.s32.totalorder %s36, 1
      %s38 = scalar_select %p37, 0, %s36
      %s39 = ssub.s32 %s26, %s38
      %p40 = scmp.eq.s32.totalorder %s39, 0
      %s42 = sadd.s32 %s41, 1
      %s43 = scalar_select %p40, %s41, %s42
      %p46 = pneg %p40
      %p47 = scmp.eq.s32.totalorder %s19, 1
      %p48 = por %p46, %p47
      %p49 = scmp.ne.s32.totalorder %s41, %s44
      %p50 = scmp.eq.s32.totalorder %s19, 0
      %p51 = por %p49, %p50
      %p52 = scmp.ne.s32.totalorder %s41, %s44
      %p53 = scmp.eq.s32.totalorder %s24, 1
      %p54 = por %p52, %p53
      %p55 = scmp.ne.s32.totalorder %s44, %s45
      %p56 = scmp.eq.s32.totalorder %s24, 0
      %p57 = por %p55, %p56
      %p58 = scmp.ne.s32.totalorder %s44, %s45
      %p59 = scmp.eq.s32.totalorder %s25, 1
      %p60 = por %p58, %p59
      %p62 = scmp.ne.s32.totalorder %s45, %s61
      %p63 = scmp.eq.s32.totalorder %s25, 0
      %p64 = por %p62, %p63
      %s66 = sadd.s32 %s65, 1
      %p69 = scmp.eq.s32.totalorder %s19, 1
      %p70 = scmp.ne.s32.totalorder %s65, %s67
      %p71 = scmp.eq.s32.totalorder %s19, 0
      %p72 = por %p70, %p71
      %p73 = scmp.ne.s32.totalorder %s65, %s67
      %p74 = scmp.eq.s32.totalorder %s24, 1
      %p75 = por %p73, %p74
      %p76 = scmp.ne.s32.totalorder %s67, %s68
      %p77 = scmp.eq.s32.totalorder %s24, 0
      %p78 = por %p76, %p77
      %p79 = scmp.ne.s32.totalorder %s67, %s68
      %p80 = scmp.eq.s32.totalorder %s25, 1
      %p81 = por %p79, %p80
      %p83 = scmp.ne.s32.totalorder %s68, %s82
      %p84 = scmp.eq.s32.totalorder %s25, 0
      %p85 = por %p83, %p84
      %s87 = sadd.s32 %s86, 1
      %p90 = scmp.eq.s32.totalorder %s19, 1
      %p91 = scmp.ne.s32.totalorder %s86, %s88
      %p92 = scmp.eq.s32.totalorder %s19, 0
      %p93 = por %p91, %p92
      %p94 = scmp.ne.s32.totalorder %s86, %s88
      %p95 = scmp.eq.s32.totalorder %s24, 1
      %p96 = por %p94, %p95
      %p97 = scmp.ne.s32.totalorder %s88, %s89
      %p98 = scmp.eq.s32.totalorder %s24, 0
      %p99 = por %p97, %p98
      %p100 = scmp.ne.s32.totalorder %s88, %s89
      %p101 = scmp.eq.s32.totalorder %s25, 1
      %p102 = por %p100, %p101
      %p104 = scmp.ne.s32.totalorder %s89, %s103
      %p105 = scmp.eq.s32.totalorder %s25, 0
      %p106 = por %p104, %p105
      %s107 = ssub.s32 %s27, %s34
      %p108 = scmp.eq.s32.totalorder %s107, 0
      %s110 = sadd.s32 %s109, 1
      %s111 = scalar_select %p108, %s109, %s110
      %p114 = pneg %p108
      %p115 = scmp.eq.s32.totalorder %s19, 1
      %p116 = por %p114, %p115
      %p117 = scmp.ne.s32.totalorder %s109, %s112
      %p118 = scmp.eq.s32.totalorder %s19, 0
      %p119 = por %p117, %p118
      %p120 = scmp.ne.s32.totalorder %s109, %s112
      %p121 = scmp.eq.s32.totalorder %s24, 1
      %p122 = por %p120, %p121
      %p123 = scmp.ne.s32.totalorder %s112, %s113
      %p124 = scmp.eq.s32.totalorder %s24, 0
      %p125 = por %p123, %p124
      %p126 = scmp.ne.s32.totalorder %s112, %s113
      %p127 = scmp.eq.s32.totalorder %s25, 1
      %p128 = por %p126, %p127
      %p130 = scmp.ne.s32.totalorder %s113, %s129
      %p131 = scmp.eq.s32.totalorder %s25, 0
      %p132 = por %p130, %p131
      %s133 = ssub.s32 %s27, %s34
      %p134 = scmp.eq.s32.totalorder %s133, 0
      %s136 = sadd.s32 %s135, 1
      %s137 = scalar_select %p134, %s135, %s136
      %p140 = pneg %p134
      %p141 = scmp.eq.s32.totalorder %s19, 1
      %p142 = por %p140, %p141
      %p143 = scmp.ne.s32.totalorder %s135, %s138
      %p144 = scmp.eq.s32.totalorder %s19, 0
      %p145 = por %p143, %p144
      %p146 = scmp.ne.s32.totalorder %s135, %s138
      %p147 = scmp.eq.s32.totalorder %s24, 1
      %p148 = por %p146, %p147
      %p149 = scmp.ne.s32.totalorder %s138, %s139
      %p150 = scmp.eq.s32.totalorder %s24, 0
      %p151 = por %p149, %p150
      %p152 = scmp.ne.s32.totalorder %s138, %s139
      %p153 = scmp.eq.s32.totalorder %s25, 1
      %p154 = por %p152, %p153
      %p156 = scmp.ne.s32.totalorder %s139, %s155
      %p157 = scmp.eq.s32.totalorder %s25, 0
      %p158 = por %p156, %p157
      %s159 = ssub.s32 %s27, %s34
      %p160 = scmp.eq.s32.totalorder %s159, 0
      %s162 = sadd.s32 %s161, 1
      %s163 = scalar_select %p160, %s161, %s162
      %p166 = pneg %p160
      %p167 = scmp.eq.s32.totalorder %s19, 1
      %p168 = por %p166, %p167
      %p169 = scmp.ne.s32.totalorder %s161, %s164
      %p170 = scmp.eq.s32.totalorder %s19, 0
      %p171 = por %p169, %p170
      %p172 = scmp.ne.s32.totalorder %s161, %s164
      %p173 = scmp.eq.s32.totalorder %s24, 1
      %p174 = por %p172, %p173
      %p175 = scmp.ne.s32.totalorder %s164, %s165
      %p176 = scmp.eq.s32.totalorder %s24, 0
      %p177 = por %p175, %p176
      %p178 = scmp.ne.s32.totalorder %s164, %s165
      %p179 = scmp.eq.s32.totalorder %s25, 1
      %p180 = por %p178, %p179
      %p182 = scmp.ne.s32.totalorder %s165, %s181
      %p183 = scmp.eq.s32.totalorder %s25, 0
      %p184 = por %p182, %p183
      %s185 = ssub.s32 %s27, %s34
      %p186 = scmp.eq.s32.totalorder %s185, 0
      %s188 = sadd.s32 %s187, 1
      %s189 = scalar_select %p186, %s187, %s188
      %p192 = pneg %p186
      %p193 = scmp.eq.s32.totalorder %s19, 1
      %p194 = por %p192, %p193
      %p195 = scmp.ne.s32.totalorder %s187, %s190
      %p196 = scmp.eq.s32.totalorder %s19, 0
      %p197 = por %p195, %p196
      %p198 = scmp.ne.s32.totalorder %s187, %s190
      %p199 = scmp.eq.s32.totalorder %s24, 1
      %p200 = por %p198, %p199
      %p201 = scmp.ne.s32.totalorder %s190, %s191
      %p202 = scmp.eq.s32.totalorder %s24, 0
      %p203 = por %p201, %p202
      %p204 = scmp.ne.s32.totalorder %s190, %s191
      %p205 = scmp.eq.s32.totalorder %s25, 1
      %p206 = por %p204, %p205
      %p208 = scmp.ne.s32.totalorder %s191, %s207
      %p209 = scmp.eq.s32.totalorder %s25, 0
      %p210 = por %p208, %p209
      %s211 = ssub.s32 %s27, %s34
      %p212 = scmp.eq.s32.totalorder %s211, 0
      %s214 = sadd.s32 %s213, 1
      %s215 = scalar_select %p212, %s213, %s214
      %p218 = pneg %p212
      %p219 = scmp.eq.s32.totalorder %s19, 1
      %p220 = por %p218, %p219
      %p221 = scmp.ne.s32.totalorder %s213, %s216
      %p222 = scmp.eq.s32.totalorder %s19, 0
      %p223 = por %p221, %p222
      %p224 = scmp.ne.s32.totalorder %s213, %s216
      %p225 = scmp.eq.s32.totalorder %s24, 1
      %p226 = por %p224, %p225
      %p227 = scmp.ne.s32.totalorder %s216, %s217
      %p228 = scmp.eq.s32.totalorder %s24, 0
      %p229 = por %p227, %p228
      %p230 = scmp.ne.s32.totalorder %s216, %s217
      %p231 = scmp.eq.s32.totalorder %s25, 1
      %p232 = por %p230, %p231
      %p234 = scmp.ne.s32.totalorder %s217, %s233
      %p235 = scmp.eq.s32.totalorder %s25, 0
      %p236 = por %p234, %p235
      %s237 = ssub.s32 %s27, %s34
      %p238 = scmp.eq.s32.totalorder %s237, 0
      %s240 = sadd.s32 %s239, 1
      %s241 = scalar_select %p238, %s239, %s240
      %p244 = pneg %p238
      %p245 = scmp.eq.s32.totalorder %s19, 1
      %p246 = por %p244, %p245
      %p247 = scmp.ne.s32.totalorder %s239, %s242
      %p248 = scmp.eq.s32.totalorder %s19, 0
      %p249 = por %p247, %p248
      %p250 = scmp.ne.s32.totalorder %s239, %s242
      %p251 = scmp.eq.s32.totalorder %s24, 1
      %p252 = por %p250, %p251
      %p253 = scmp.ne.s32.totalorder %s242, %s243
      %p254 = scmp.eq.s32.totalorder %s24, 0
      %p255 = por %p253, %p254
      %p256 = scmp.ne.s32.totalorder %s242, %s243
      %p257 = scmp.eq.s32.totalorder %s25, 1
      %p258 = por %p256, %p257
      %p260 = scmp.ne.s32.totalorder %s243, %s259
      %p261 = scmp.eq.s32.totalorder %s25, 0
      %p262 = por %p260, %p261
      %s263 = ssub.s32 %s27, %s34
      %p264 = scmp.eq.s32.totalorder %s263, 0
      %s266 = sadd.s32 %s265, 1
      %s267 = scalar_select %p264, %s265, %s266
      %p270 = pneg %p264
      %p271 = scmp.eq.s32.totalorder %s19, 1
      %p272 = por %p270, %p271
      %p273 = scmp.ne.s32.totalorder %s265, %s268
      %p274 = scmp.eq.s32.totalorder %s19, 0
      %p275 = por %p273, %p274
      %p276 = scmp.ne.s32.totalorder %s265, %s268
      %p277 = scmp.eq.s32.totalorder %s24, 1
      %p278 = por %p276, %p277
      %p279 = scmp.ne.s32.totalorder %s268, %s269
      %p280 = scmp.eq.s32.totalorder %s24, 0
      %p281 = por %p279, %p280
      %p282 = scmp.ne.s32.totalorder %s268, %s269
      %p283 = scmp.eq.s32.totalorder %s25, 1
      %p284 = por %p282, %p283
      %p286 = scmp.ne.s32.totalorder %s269, %s285
      %p287 = scmp.eq.s32.totalorder %s25, 0
      %p288 = por %p286, %p287
      %s290 = sadd.s32 %s289, 1
      %p293 = scmp.eq.s32.totalorder %s19, 1
      %p294 = scmp.ne.s32.totalorder %s289, %s291
      %p295 = scmp.eq.s32.totalorder %s19, 0
      %p296 = por %p294, %p295
      %p297 = scmp.ne.s32.totalorder %s289, %s291
      %p298 = scmp.eq.s32.totalorder %s24, 1
      %p299 = por %p297, %p298
      %p300 = scmp.ne.s32.totalorder %s291, %s292
      %p301 = scmp.eq.s32.totalorder %s24, 0
      %p302 = por %p300, %p301
      %p303 = scmp.ne.s32.totalorder %s291, %s292
      %p304 = scmp.eq.s32.totalorder %s25, 1
      %p305 = por %p303, %p304
      %p307 = scmp.ne.s32.totalorder %s292, %s306
      %p308 = scmp.eq.s32.totalorder %s25, 0
      %p309 = por %p307, %p308
      %s311 = sadd.s32 %s310, 1
      %p314 = scmp.eq.s32.totalorder %s19, 1
      %p315 = scmp.ne.s32.totalorder %s310, %s312
      %p316 = scmp.eq.s32.totalorder %s19, 0
      %p317 = por %p315, %p316
      %p318 = scmp.ne.s32.totalorder %s310, %s312
      %p319 = scmp.eq.s32.totalorder %s24, 1
      %p320 = por %p318, %p319
      %p321 = scmp.ne.s32.totalorder %s312, %s313
      %p322 = scmp.eq.s32.totalorder %s24, 0
      %p323 = por %p321, %p322
      %p324 = scmp.ne.s32.totalorder %s312, %s313
      %p325 = scmp.eq.s32.totalorder %s25, 1
      %p326 = por %p324, %p325
      %p328 = scmp.ne.s32.totalorder %s313, %s327
      %p329 = scmp.eq.s32.totalorder %s25, 0
      %p330 = por %p328, %p329
      %s331 = ssub.s32 %s26, %s38
      %p332 = scmp.eq.s32.totalorder %s331, 0
      %s334 = sadd.s32 %s333, 1
      %s335 = scalar_select %p332, %s333, %s334
      %p338 = pneg %p332
      %p339 = scmp.eq.s32.totalorder %s19, 1
      %p340 = por %p338, %p339
      %p341 = scmp.ne.s32.totalorder %s333, %s336
      %p342 = scmp.eq.s32.totalorder %s19, 0
      %p343 = por %p341, %p342
      %p344 = scmp.ne.s32.totalorder %s333, %s336
      %p345 = scmp.eq.s32.totalorder %s24, 1
      %p346 = por %p344, %p345
      %p347 = scmp.ne.s32.totalorder %s336, %s337
      %p348 = scmp.eq.s32.totalorder %s24, 0
      %p349 = por %p347, %p348
      %p350 = scmp.ne.s32.totalorder %s336, %s337
      %p351 = scmp.eq.s32.totalorder %s25, 1
      %p352 = por %p350, %p351
      %p354 = scmp.ne.s32.totalorder %s337, %s353
      %p355 = scmp.eq.s32.totalorder %s25, 0
      %p356 = por %p354, %p355
      %p357 = scmp.le.s32.totalorder 1, %s19
      %p358 = scmp.lt.s32.totalorder %s19, 3
      %p359 = pnand %p357, %p358
      %p360 = pneg %p359
      // Predicated region
      $region9: #{transformer_forward.1} parent=5 // pred_check
        _
      $region10: #{transformer_forward.1} parent=5 // pred_check_branch
        %362 = sbr.rel (%p359) target = $region12
      $region11: #{transformer_forward.1} parent=5 // pred_region
        %s363 = ssub.s32 %s19, 1
        // Predicated region
        $region13: #{transformer_forward.1} parent=11 // pred_check
          %p364 = pneg %p57
        $region14: #{transformer_forward.1} parent=11 // pred_check_branch
          %366 = sbr.rel (%p364) target = $region16
        $region15: #{transformer_forward.1} parent=11 // pred_region
          %s367 = smul.u32 2, %s28
          %p368 = scmp.lt.s32.totalorder %s367, 1
          %s369 = scalar_select %p368, %s367, 1
          %s370 = smul.addr %s369, 8
          %s371 = scalar_lea.vmem %s0, %s370
          %s372 = smul.u32 2, %s28
        $region16: #{transformer_forward.1} parent=11 // pred_fallthru
          _
        // Predicated region
        $region17: #{transformer_forward.1} parent=11 // pred_check
          %p373 = pneg %p78
        $region18: #{transformer_forward.1} parent=11 // pred_check_branch
          %375 = sbr.rel (%p373) target = $region20
        $region19: #{transformer_forward.1} parent=11 // pred_region
          _
        $region20: #{transformer_forward.1} parent=11 // pred_fallthru
          _
        // Predicated region
        $region21: #{transformer_forward.1} parent=11 // pred_check
          %p376 = pneg %p99
        $region22: #{transformer_forward.1} parent=11 // pred_check_branch
          %378 = sbr.rel (%p376) target = $region24
        $region23: #{transformer_forward.1} parent=11 // pred_region
          _
        $region24: #{transformer_forward.1} parent=11 // pred_fallthru
          _
        // Predicated region
        $region25: #{transformer_forward.1} parent=11 // pred_check
          %p379 = pneg %p302
        $region26: #{transformer_forward.1} parent=11 // pred_check_branch
          %381 = sbr.rel (%p379) target = $region28
        $region27: #{transformer_forward.1} parent=11 // pred_region
          _
        $region28: #{transformer_forward.1} parent=11 // pred_fallthru
          _
        // Predicated region
        $region29: #{transformer_forward.1} parent=11 // pred_check
          %p382 = pneg %p323
        $region30: #{transformer_forward.1} parent=11 // pred_check_branch
          %384 = sbr.rel (%p382) target = $region32
        $region31: #{transformer_forward.1} parent=11 // pred_region
          _
        $region32: #{transformer_forward.1} parent=11 // pred_fallthru
          _
      $region12: #{transformer_forward.1} parent=5 // pred_fallthru
        _
      %p385 = scmp.lt.s32.totalorder %s19, 2
      // Predicated region
      $region33: #{transformer_forward.1} parent=5 // pred_check
        %p386 = pneg %p385
      $region34: #{transformer_forward.1} parent=5 // pred_check_branch
        %388 = sbr.rel (%p386) target = $region36
      $region35: #{transformer_forward.1} parent=5 // pred_region
        // Predicated region
        $region37: #{transformer_forward.1} parent=35 // pred_check
          %p389 = pneg %p119
        $region38: #{transformer_forward.1} parent=35 // pred_check_branch
          %391 = sbr.rel (%p389) target = $region40
        $region39: #{transformer_forward.1} parent=35 // pred_region
          %p392 = scmp.lt.s32.totalorder %s27, 1
          %s393 = scalar_select %p392, %s27, 1
          %s394 = smul.addr %s393, 4
          %s395 = smul.addr %s394, 8
          %s396 = scalar_lea.vmem %s3, %s395
        $region40: #{transformer_forward.1} parent=35 // pred_fallthru
          _
        // Predicated region
        $region41: #{transformer_forward.1} parent=35 // pred_check
          %p397 = pneg %p145
        $region42: #{transformer_forward.1} parent=35 // pred_check_branch
          %399 = sbr.rel (%p397) target = $region44
        $region43: #{transformer_forward.1} parent=35 // pred_region
          %p400 = scmp.lt.s32.totalorder %s27, 1
          %s401 = scalar_select %p400, %s27, 1
          %s402 = scalar_lea.vmem %s4, %s401
        $region44: #{transformer_forward.1} parent=35 // pred_fallthru
          _
        // Predicated region
        $region45: #{transformer_forward.1} parent=35 // pred_check
          %p403 = pneg %p171
        $region46: #{transformer_forward.1} parent=35 // pred_check_branch
          %405 = sbr.rel (%p403) target = $region48
        $region47: #{transformer_forward.1} parent=35 // pred_region
          %p406 = scmp.lt.s32.totalorder %s27, 1
          %s407 = scalar_select %p406, %s27, 1
          %s408 = smul.addr %s407, 4
          %s409 = smul.addr %s408, 8
          %s410 = scalar_lea.vmem %s5, %s409
        $region48: #{transformer_forward.1} parent=35 // pred_fallthru
          _
        // Predicated region
        $region49: #{transformer_forward.1} parent=35 // pred_check
          %p411 = pneg %p197
        $region50: #{transformer_forward.1} parent=35 // pred_check_branch
          %413 = sbr.rel (%p411) target = $region52
        $region51: #{transformer_forward.1} parent=35 // pred_region
          %p414 = scmp.lt.s32.totalorder %s27, 1
          %s415 = scalar_select %p414, %s27, 1
          %s416 = smul.addr %s415, 4
          %s417 = smul.addr %s416, 8
          %s418 = scalar_lea.vmem %s6, %s417
        $region52: #{transformer_forward.1} parent=35 // pred_fallthru
          _
        // Predicated region
        $region53: #{transformer_forward.1} parent=35 // pred_check
          %p419 = pneg %p223
        $region54: #{transformer_forward.1} parent=35 // pred_check_branch
          %421 = sbr.rel (%p419) target = $region56
        $region55: #{transformer_forward.1} parent=35 // pred_region
          %p422 = scmp.lt.s32.totalorder %s27, 1
          %s423 = scalar_select %p422, %s27, 1
          %s424 = scalar_lea.vmem %s7, %s423
        $region56: #{transformer_forward.1} parent=35 // pred_fallthru
          _
        // Predicated region
        $region57: #{transformer_forward.1} parent=35 // pred_check
          %p425 = pneg %p249
        $region58: #{transformer_forward.1} parent=35 // pred_check_branch
          %427 = sbr.rel (%p425) target = $region60
        $region59: #{transformer_forward.1} parent=35 // pred_region
          %p428 = scmp.lt.s32.totalorder %s27, 1
          %s429 = scalar_select %p428, %s27, 1
          %s430 = smul.addr %s429, 8
          %s431 = smul.addr %s430, 8
          %s432 = scalar_lea.vmem %s8, %s431
        $region60: #{transformer_forward.1} parent=35 // pred_fallthru
          _
        // Predicated region
        $region61: #{transformer_forward.1} parent=35 // pred_check
          %p433 = pneg %p275
        $region62: #{transformer_forward.1} parent=35 // pred_check_branch
          %435 = sbr.rel (%p433) target = $region64
        $region63: #{transformer_forward.1} parent=35 // pred_region
          %p436 = scmp.lt.s32.totalorder %s27, 1
          %s437 = scalar_select %p436, %s27, 1
          %s438 = smul.addr %s437, 8
          %s439 = scalar_lea.vmem %s9, %s438
        $region64: #{transformer_forward.1} parent=35 // pred_fallthru
          _
      $region36: #{transformer_forward.1} parent=5 // pred_fallthru
        _
      %p440 = scmp.le.s32.totalorder 1, %s19
      %p441 = scmp.lt.s32.totalorder %s19, 3
      %p442 = pnand %p440, %p441
      %p443 = pneg %p442
      // Predicated region
      $region65: #{transformer_forward.1} parent=5 // pred_check
        _
      $region66: #{transformer_forward.1} parent=5 // pred_check_branch
        %445 = sbr.rel (%p442) target = $region68
      $region67: #{transformer_forward.1} parent=5 // pred_region
        %s446 = ssub.s32 %s19, 1
        %s447 = smul.u32 2, %s28
        %p448 = scmp.lt.s32.totalorder %s447, 1
        %s449 = scalar_select %p448, %s447, 1
        %s450 = smul.addr %s449, 8
        %s451 = scalar_lea.vmem %s0, %s450
        %p452 = pneg %p57
        %p453 = pneg %p54
        %p454 = pneg %p78
        %p455 = pneg %p75
        %p456 = pneg %p99
        %p457 = pneg %p96
        %p458 = scmp.lt.s32.totalorder %s29, 1
        %s459 = scalar_select %p458, %s29, 1
        %s460 = smul.addr %s459, 4
        %s461 = smul.addr %s460, 8
        %s462 = scalar_lea.vmem %s3, %s461
        %p463 = pneg %p125
        %p464 = pneg %p122
        %p465 = scmp.lt.s32.totalorder %s29, 1
        %s466 = scalar_select %p465, %s29, 1
        %s467 = scalar_lea.vmem %s4, %s466
        %p468 = pneg %p151
        %p469 = pneg %p148
        %p470 = scmp.lt.s32.totalorder %s29, 1
        %s471 = scalar_select %p470, %s29, 1
        %s472 = smul.addr %s471, 4
        %s473 = smul.addr %s472, 8
        %s474 = scalar_lea.vmem %s5, %s473
        %p475 = pneg %p177
        %p476 = pneg %p174
        %p477 = scmp.lt.s32.totalorder %s29, 1
        %s478 = scalar_select %p477, %s29, 1
        %s479 = smul.addr %s478, 4
        %s480 = smul.addr %s479, 8
        %s481 = scalar_lea.vmem %s6, %s480
        %p482 = pneg %p203
        %p483 = pneg %p200
        %p484 = scmp.lt.s32.totalorder %s29, 1
        %s485 = scalar_select %p484, %s29, 1
        %s486 = scalar_lea.vmem %s7, %s485
        %p487 = pneg %p229
        %p488 = pneg %p226
        %p489 = scmp.lt.s32.totalorder %s29, 1
        %s490 = scalar_select %p489, %s29, 1
        %s491 = smul.addr %s490, 8
        %s492 = smul.addr %s491, 8
        %s493 = scalar_lea.vmem %s8, %s492
        %p494 = pneg %p255
        %p495 = pneg %p252
        %p496 = scmp.lt.s32.totalorder %s29, 1
        %s497 = scalar_select %p496, %s29, 1
        %s498 = smul.addr %s497, 8
        %s499 = scalar_lea.vmem %s9, %s498
        %p500 = pneg %p281
        %p501 = pneg %p278
        %p502 = pneg %p302
        %p503 = pneg %p299
        %p504 = pneg %p323
        %p505 = pneg %p320
        %p506 = pneg %p349
        %p507 = pneg %p346
        %s508 = smul.u32 2, %s28
        %p509 = scmp.lt.s32.totalorder %s508, 1
        %s510 = scalar_select %p509, %s508, 1
        %s511 = smul.addr %s510, 8
        %s512 = scalar_lea.vmem %s0, %s511
        %s513 = smul.u32 2, %s28
        %p514 = scmp.lt.s32.totalorder %s29, 1
        %s515 = scalar_select %p514, %s29, 1
        %s516 = smul.addr %s515, 4
        %s517 = smul.addr %s516, 8
        %s518 = scalar_lea.vmem %s3, %s517
        %p519 = scmp.lt.s32.totalorder %s29, 1
        %s520 = scalar_select %p519, %s29, 1
        %s521 = scalar_lea.vmem %s4, %s520
        %p522 = scmp.lt.s32.totalorder %s29, 1
        %s523 = scalar_select %p522, %s29, 1
        %s524 = smul.addr %s523, 4
        %s525 = smul.addr %s524, 8
        %s526 = scalar_lea.vmem %s5, %s525
        %p527 = scmp.lt.s32.totalorder %s29, 1
        %s528 = scalar_select %p527, %s29, 1
        %s529 = smul.addr %s528, 4
        %s530 = smul.addr %s529, 8
        %s531 = scalar_lea.vmem %s6, %s530
        %p532 = scmp.lt.s32.totalorder %s29, 1
        %s533 = scalar_select %p532, %s29, 1
        %s534 = scalar_lea.vmem %s7, %s533
        %p535 = scmp.lt.s32.totalorder %s29, 1
        %s536 = scalar_select %p535, %s29, 1
        %s537 = smul.addr %s536, 8
        %s538 = smul.addr %s537, 8
        %s539 = scalar_lea.vmem %s8, %s538
        %p540 = scmp.lt.s32.totalorder %s29, 1
        %s541 = scalar_select %p540, %s29, 1
        %s542 = smul.addr %s541, 8
        %s543 = scalar_lea.vmem %s9, %s542
        %p544 = scmp.eq.s32.totalorder %s29, 0
        // Predicated region
        $region69: #{transformer_forward.1} parent=67 // pred_check
          %p545 = pneg %p544
        $region70: #{transformer_forward.1} parent=67 // pred_check_branch
          %547 = sbr.rel (%p545) target = $region72
        $region71: #{transformer_forward.1} parent=67 // pred_region
          %v548 = vld [vmem:[%s512] sm:$0xff]
          %v549 = vld [vmem:[%s512 + $0x8] sm:$0xff]
          %v550 = vld [vmem:[%s1] sm:$0xff]
          %v551 = vld [vmem:[%s1 + $0x8] sm:$0xff]
          %v552 = vld [vmem:[%s2] sm:$0x1]
          %v554 = vlaneseq
          %v555 = vshrl.u32 %v554, 7
          %v556 = vsub.s32 0, %v555
          %v557 = vrot.slane %v552, %v556
          %vm559 = vcmask 130048
          %v561 = vsel %vm559, %v548, 0
          %v564 = vsel %vm559, %v549, 0
          %566 = vmatprep.subr.mxu0 0.0
          %567 = vmatpush1.msra.mxu0 %v550
          %568 = vmatprep.subr.mxu0 0.0
          %569 = vmatpush1.msra.mxu0 %v551
          %570 = vmatprep.subr.mxu0 0.0
          %571 = vmatpush1.msra.mxu0 0.0
          %572 = vmatprep.subr.mxu0 0.0
          %573 = vmatpush1.msra.mxu0 0.0
          %574 = vmatprep.subr.mxu0 0.0
          %575 = vmatpush1.msra.mxu0 0.0
          %576 = vmatprep.subr.mxu0 0.0
          %577 = vmatpush1.msra.mxu0 0.0
          %578 = vmatprep.subr.mxu0 0.0
          %579 = vmatpush1.msra.mxu0 0.0
          %580 = vmatprep.subr.mxu0 0.0
          %581 = vmatpush1.msra.mxu0 0.0
          %582 = vmatprep.subr.mxu0 0.0
          %583 = vmatpush1.msra.mxu0 0.0
          %584 = vmatprep.subr.mxu0 0.0
          %585 = vmatpush1.msra.mxu0 0.0
          %586 = vmatprep.subr.mxu0 0.0
          %587 = vmatpush1.msra.mxu0 0.0
          %588 = vmatprep.subr.mxu0 0.0
          %589 = vmatpush1.msra.mxu0 0.0
          %590 = vmatprep.subr.mxu0 0.0
          %591 = vmatpush1.msra.mxu0 0.0
          %592 = vmatprep.subr.mxu0 0.0
          %593 = vmatpush1.msra.mxu0 0.0
          %594 = vmatprep.subr.mxu0 0.0
          %595 = vmatpush1.msra.mxu0 0.0
          %596 = vmatprep.subr.mxu0 0.0
          %597 = vmatpush1.msra.mxu0 0.0
          %598 = vmatprep.subr.mxu0 0.0
          %599 = vmatpush1.msra.mxu0 0.0
          %600 = vmatprep.subr.mxu0 0.0
          %601 = vmatpush1.msra.mxu0 0.0
          %602 = vmatprep.subr.mxu0 0.0
          %603 = vmatpush1.msra.mxu0 0.0
          %604 = vmatprep.subr.mxu0 0.0
          %605 = vmatpush1.msra.mxu0 0.0
          %606 = vmatprep.subr.mxu0 0.0
          %607 = vmatpush1.msra.mxu0 0.0
          %608 = vmatprep.subr.mxu0 0.0
          %609 = vmatpush1.msra.mxu0 0.0
          %610 = vmatprep.subr.mxu0 0.0
          %611 = vmatpush1.msra.mxu0 0.0
          %612 = vmatprep.subr.mxu0 0.0
          %613 = vmatpush1.msra.mxu0 0.0
          %614 = vmatprep.subr.mxu0 0.0
          %615 = vmatpush1.msra.mxu0 0.0
          %616 = vmatprep.subr.mxu0 0.0
          %617 = vmatpush1.msra.mxu0 0.0
          %618 = vmatprep.subr.mxu0 0.0
          %619 = vmatpush1.msra.mxu0 0.0
          %620 = vmatprep.subr.mxu0 0.0
          %621 = vmatpush1.msra.mxu0 0.0
          %622 = vmatprep.subr.mxu0 0.0
          %623 = vmatpush1.msra.mxu0 0.0
          %624 = vmatprep.subr.mxu0 0.0
          %625 = vmatpush1.msra.mxu0 0.0
          %626 = vmatprep.subr.mxu0 0.0
          %627 = vmatpush1.msra.mxu0 0.0
          %628 = vmatprep.subr.mxu0 0.0
          %629 = vmatpush1.msra.mxu0 0.0
          %630 = vmatprep.mubr.f32.mxu0 0.0
          %631 = vmatmul.mubr.f32.gmra.mrb[0].mxu0 %v561
          %v632 = vpop.f32.mrb[0].mxu0
          %v633 = vadd.f32 %v557, %v632
          %v634 = vpop.f32.mrb[0].mxu0
          %635 = vmatprep.mubr.f32.mxu0 0.0
          %636 = vmatmul.mubr.f32.gmra.mrb[0].mxu0 %v564
          %v637 = vpop.f32.mrb[0].mxu0
          %v638 = vadd.f32 %v557, %v637
          %v639 = vpop.f32.mrb[0].mxu0
          %640 = vdwg.mxu0
          %vm641 = vcmask 261120
          %642 = vst.msk [vmem:[#allocation2] sm:$0xff] %vm641, %v633
          %643 = vst.msk [vmem:[#allocation2 + $0x8] sm:$0xff] %vm641, %v638
        $region72: #{transformer_forward.1} parent=67 // pred_fallthru
          _
        %v644 = vld [vmem:[#allocation2] sm:$0xff]
        %v645 = vld [vmem:[#allocation2 + $0x8] sm:$0xff]
        %v646 = vld [vmem:[%s543] sm:$0xff]
        %v647 = vld [vmem:[%s518] sm:$0xff]
        %v648 = vld [vmem:[%s518 + $0x8] sm:$0xff]
        %v649 = vld [vmem:[%s518 + $0x10] sm:$0xff]
        %v650 = vld [vmem:[%s518 + $0x18] sm:$0xff]
        %v651 = vld [vmem:[%s521] sm:$0x1]
        %v653 = vlaneseq
        %v654 = vshrl.u32 %v653, 7
        %v655 = vsub.s32 0, %v654
        %v656 = vrot.slane %v651, %v655
        %vm658 = vcmask 261120
        %v660 = vsel %vm658, %v644, 0
        %v663 = vsel %vm658, %v645, 0
        %665 = vmatprep.subr.mxu0 0.0
        %666 = vmatpush1.msra.mxu0 %v647
        %667 = vmatprep.subr.mxu0 0.0
        %668 = vmatpush1.msra.mxu0 %v648
        %669 = vmatprep.subr.mxu0 0.0
        %670 = vmatpush1.msra.mxu0 %v649
        %671 = vmatprep.subr.mxu0 0.0
        %672 = vmatpush1.msra.mxu0 %v650
        %673 = vmatprep.subr.mxu0 0.0
        %674 = vmatpush1.msra.mxu0 0.0
        %675 = vmatprep.subr.mxu0 0.0
        %676 = vmatpush1.msra.mxu0 0.0
        %677 = vmatprep.subr.mxu0 0.0
        %678 = vmatpush1.msra.mxu0 0.0
        %679 = vmatprep.subr.mxu0 0.0
        %680 = vmatpush1.msra.mxu0 0.0
        %681 = vmatprep.subr.mxu0 0.0
        %682 = vmatpush1.msra.mxu0 0.0
        %683 = vmatprep.subr.mxu0 0.0
        %684 = vmatpush1.msra.mxu0 0.0
        %685 = vmatprep.subr.mxu0 0.0
        %686 = vmatpush1.msra.mxu0 0.0
        %687 = vmatprep.subr.mxu0 0.0
        %688 = vmatpush1.msra.mxu0 0.0
        %689 = vmatprep.subr.mxu0 0.0
        %690 = vmatpush1.msra.mxu0 0.0
        %691 = vmatprep.subr.mxu0 0.0
        %692 = vmatpush1.msra.mxu0 0.0
        %693 = vmatprep.subr.mxu0 0.0
        %694 = vmatpush1.msra.mxu0 0.0
        %695 = vmatprep.subr.mxu0 0.0
        %696 = vmatpush1.msra.mxu0 0.0
        %697 = vmatprep.subr.mxu0 0.0
        %698 = vmatpush1.msra.mxu0 0.0
        %699 = vmatprep.subr.mxu0 0.0
        %700 = vmatpush1.msra.mxu0 0.0
        %701 = vmatprep.subr.mxu0 0.0
        %702 = vmatpush1.msra.mxu0 0.0
        %703 = vmatprep.subr.mxu0 0.0
        %704 = vmatpush1.msra.mxu0 0.0
        %705 = vmatprep.subr.mxu0 0.0
        %706 = vmatpush1.msra.mxu0 0.0
        %707 = vmatprep.subr.mxu0 0.0
        %708 = vmatpush1.msra.mxu0 0.0
        %709 = vmatprep.subr.mxu0 0.0
        %710 = vmatpush1.msra.mxu0 0.0
        %711 = vmatprep.subr.mxu0 0.0
        %712 = vmatpush1.msra.mxu0 0.0
        %713 = vmatprep.subr.mxu0 0.0
        %714 = vmatpush1.msra.mxu0 0.0
        %715 = vmatprep.subr.mxu0 0.0
        %716 = vmatpush1.msra.mxu0 0.0
        %717 = vmatprep.subr.mxu0 0.0
        %718 = vmatpush1.msra.mxu0 0.0
        %719 = vmatprep.subr.mxu0 0.0
        %720 = vmatpush1.msra.mxu0 0.0
        %721 = vmatprep.subr.mxu0 0.0
        %722 = vmatpush1.msra.mxu0 0.0
        %723 = vmatprep.subr.mxu0 0.0
        %724 = vmatpush1.msra.mxu0 0.0
        %725 = vmatprep.subr.mxu0 0.0
        %726 = vmatpush1.msra.mxu0 0.0
        %727 = vmatprep.subr.mxu0 0.0
        %728 = vmatpush1.msra.mxu0 0.0
        %729 = vmatprep.mubr.f32.mxu0 0.0
        %730 = vmatmul.mubr.f32.gmra.mrb[0].mxu0 %v660
        %v731 = vpop.f32.mrb[0].mxu0
        %v732 = vadd.f32 %v656, %v731
        %v733 = vpop.f32.mrb[0].mxu0
        %734 = vmatprep.mubr.f32.mxu0 0.0
        %735 = vmatmul.mubr.f32.gmra.mrb[0].mxu0 %v663
        %v736 = vpop.f32.mrb[0].mxu0
        %v737 = vadd.f32 %v656, %v736
        %v738 = vpop.f32.mrb[0].mxu0
        %739 = vdwg.mxu0
        %741 = vrot.lane.b32.xlu0 %v732, 96
        %v742 = vpop.permute.xlu0 %741
        %vm743 = vcmask 64512
        %v744 = vsel %vm743, %v732, 0
        %v746 = vsel %vm743, %v742, 0
        %748 = vmatprep.subr.mxu0 0.0
        %749 = vmatpush1.xpose.msra.mxu0 %v746
        %750 = vmatprep.subr.mxu0 0.0
        %751 = vmatpush1.xpose.msra.mxu0 0.0
        %752 = vmatprep.subr.mxu0 0.0
        %753 = vmatpush1.xpose.msra.mxu0 0.0
        %754 = vmatprep.subr.mxu0 0.0
        %755 = vmatpush1.xpose.msra.mxu0 0.0
        %756 = vmatprep.subr.mxu0 0.0
        %757 = vmatpush1.xpose.msra.mxu0 0.0
        %758 = vmatprep.subr.mxu0 0.0
        %759 = vmatpush1.xpose.msra.mxu0 0.0
        %760 = vmatprep.subr.mxu0 0.0
        %761 = vmatpush1.xpose.msra.mxu0 0.0
        %762 = vmatprep.subr.mxu0 0.0
        %763 = vmatpush1.xpose.msra.mxu0 0.0
        %764 = vmatprep.subr.mxu0 0.0
        %765 = vmatpush1.xpose.msra.mxu0 0.0
        %766 = vmatprep.subr.mxu0 0.0
        %767 = vmatpush1.xpose.msra.mxu0 0.0
        %768 = vmatprep.subr.mxu0 0.0
        %769 = vmatpush1.xpose.msra.mxu0 0.0
        %770 = vmatprep.subr.mxu0 0.0
        %771 = vmatpush1.xpose.msra.mxu0 0.0
        %772 = vmatprep.subr.mxu0 0.0
        %773 = vmatpush1.xpose.msra.mxu0 0.0
        %774 = vmatprep.subr.mxu0 0.0
        %775 = vmatpush1.xpose.msra.mxu0 0.0
        %776 = vmatprep.subr.mxu0 0.0
        %777 = vmatpush1.xpose.msra.mxu0 0.0
        %778 = vmatprep.subr.mxu0 0.0
        %779 = vmatpush1.xpose.msra.mxu0 0.0
        %780 = vmatprep.subr.mxu0 0.0
        %781 = vmatpush1.xpose.msra.mxu0 0.0
        %782 = vmatprep.subr.mxu0 0.0
        %783 = vmatpush1.xpose.msra.mxu0 0.0
        %784 = vmatprep.subr.mxu0 0.0
        %785 = vmatpush1.xpose.msra.mxu0 0.0
        %786 = vmatprep.subr.mxu0 0.0
        %787 = vmatpush1.xpose.msra.mxu0 0.0
        %788 = vmatprep.subr.mxu0 0.0
        %789 = vmatpush1.xpose.msra.mxu0 0.0
        %790 = vmatprep.subr.mxu0 0.0
        %791 = vmatpush1.xpose.msra.mxu0 0.0
        %792 = vmatprep.subr.mxu0 0.0
        %793 = vmatpush1.xpose.msra.mxu0 0.0
        %794 = vmatprep.subr.mxu0 0.0
        %795 = vmatpush1.xpose.msra.mxu0 0.0
        %796 = vmatprep.subr.mxu0 0.0
        %797 = vmatpush1.xpose.msra.mxu0 0.0
        %798 = vmatprep.subr.mxu0 0.0
        %799 = vmatpush1.xpose.msra.mxu0 0.0
        %800 = vmatprep.subr.mxu0 0.0
        %801 = vmatpush1.xpose.msra.mxu0 0.0
        %802 = vmatprep.subr.mxu0 0.0
        %803 = vmatpush1.xpose.msra.mxu0 0.0
        %804 = vmatprep.subr.mxu0 0.0
        %805 = vmatpush1.xpose.msra.mxu0 0.0
        %806 = vmatprep.subr.mxu0 0.0
        %807 = vmatpush1.xpose.msra.mxu0 0.0
        %808 = vmatprep.subr.mxu0 0.0
        %809 = vmatpush1.xpose.msra.mxu0 0.0
        %810 = vmatprep.subr.mxu0 0.0
        %811 = vmatpush1.xpose.msra.mxu0 0.0
        %812 = vmatprep.mubr.f32.mxu0 0.0
        %813 = vmatmul.mubr.f32.gmra.mrb[0].mxu0 %v744
        %v814 = vpop.f32.mrb[0].mxu0
        %v815 = vadd.f32 0.0, %v814
        %v816 = vpop.f32.mrb[0].mxu0
        %817 = vdwg.mxu0
        %819 = vrot.lane.b32.xlu0 %v737, 96
        %v820 = vpop.permute.xlu0 %819
        %v821 = vsel %vm743, %v737, 0
        %v823 = vsel %vm743, %v820, 0
        %825 = vmatprep.subr.mxu0 0.0
        %826 = vmatpush1.xpose.msra.mxu0 %v823
        %827 = vmatprep.subr.mxu0 0.0
        %828 = vmatpush1.xpose.msra.mxu0 0.0
        %829 = vmatprep.subr.mxu0 0.0
        %830 = vmatpush1.xpose.msra.mxu0 0.0
        %831 = vmatprep.subr.mxu0 0.0
        %832 = vmatpush1.xpose.msra.mxu0 0.0
        %833 = vmatprep.subr.mxu0 0.0
        %834 = vmatpush1.xpose.msra.mxu0 0.0
        %835 = vmatprep.subr.mxu0 0.0
        %836 = vmatpush1.xpose.msra.mxu0 0.0
        %837 = vmatprep.subr.mxu0 0.0
        %838 = vmatpush1.xpose.msra.mxu0 0.0
        %839 = vmatprep.subr.mxu0 0.0
        %840 = vmatpush1.xpose.msra.mxu0 0.0
        %841 = vmatprep.subr.mxu0 0.0
        %842 = vmatpush1.xpose.msra.mxu0 0.0
        %843 = vmatprep.subr.mxu0 0.0
        %844 = vmatpush1.xpose.msra.mxu0 0.0
        %845 = vmatprep.subr.mxu0 0.0
        %846 = vmatpush1.xpose.msra.mxu0 0.0
        %847 = vmatprep.subr.mxu0 0.0
        %848 = vmatpush1.xpose.msra.mxu0 0.0
        %849 = vmatprep.subr.mxu0 0.0
        %850 = vmatpush1.xpose.msra.mxu0 0.0
        %851 = vmatprep.subr.mxu0 0.0
        %852 = vmatpush1.xpose.msra.mxu0 0.0
        %853 = vmatprep.subr.mxu0 0.0
        %854 = vmatpush1.xpose.msra.mxu0 0.0
        %855 = vmatprep.subr.mxu0 0.0
        %856 = vmatpush1.xpose.msra.mxu0 0.0
        %857 = vmatprep.subr.mxu0 0.0
        %858 = vmatpush1.xpose.msra.mxu0 0.0
        %859 = vmatprep.subr.mxu0 0.0
        %860 = vmatpush1.xpose.msra.mxu0 0.0
        %861 = vmatprep.subr.mxu0 0.0
        %862 = vmatpush1.xpose.msra.mxu0 0.0
        %863 = vmatprep.subr.mxu0 0.0
        %864 = vmatpush1.xpose.msra.mxu0 0.0
        %865 = vmatprep.subr.mxu0 0.0
        %866 = vmatpush1.xpose.msra.mxu0 0.0
        %867 = vmatprep.subr.mxu0 0.0
        %868 = vmatpush1.xpose.msra.mxu0 0.0
        %869 = vmatprep.subr.mxu0 0.0
        %870 = vmatpush1.xpose.msra.mxu0 0.0
        %871 = vmatprep.subr.mxu0 0.0
        %872 = vmatpush1.xpose.msra.mxu0 0.0
        %873 = vmatprep.subr.mxu0 0.0
        %874 = vmatpush1.xpose.msra.mxu0 0.0
        %875 = vmatprep.subr.mxu0 0.0
        %876 = vmatpush1.xpose.msra.mxu0 0.0
        %877 = vmatprep.subr.mxu0 0.0
        %878 = vmatpush1.xpose.msra.mxu0 0.0
        %879 = vmatprep.subr.mxu0 0.0
        %880 = vmatpush1.xpose.msra.mxu0 0.0
        %881 = vmatprep.subr.mxu0 0.0
        %882 = vmatpush1.xpose.msra.mxu0 0.0
        %883 = vmatprep.subr.mxu0 0.0
        %884 = vmatpush1.xpose.msra.mxu0 0.0
        %885 = vmatprep.subr.mxu0 0.0
        %886 = vmatpush1.xpose.msra.mxu0 0.0
        %887 = vmatprep.subr.mxu0 0.0
        %888 = vmatpush1.xpose.msra.mxu0 0.0
        %889 = vmatprep.mubr.f32.mxu0 0.0
        %890 = vmatmul.mubr.f32.gmra.mrb[0].mxu0 %v821
        %v891 = vpop.f32.mrb[0].mxu0
        %v892 = vadd.f32 0.0, %v891
        %v893 = vpop.f32.mrb[0].mxu0
        %894 = vdwg.mxu0
        %v895 = vsel %vm743, %v815, -inf
        %896 = vmax.xlane.f32.xlu0 %v895
        %v897 = vpop.xlane.xlu0 %896
        %v898 = vsel %vm743, %v892, -inf
        %899 = vmax.xlane.f32.xlu0 %v898
        %v900 = vpop.xlane.xlu0 %899
        %v901 = vsub.f32 %v815, %v897
        %v902 = vsub.f32 %v892, %v900
        %v903 = vmul.f32 %v901, 1.442695
        %v904 = vpow.pop %v903
        %v905 = vmul.f32 %v902, 1.442695
        %v906 = vpow.pop %v905
        %v907 = vsel %vm743, %v904, 0.0
        %908 = vadd.xlane.f32.xlu0 %v907
        %v909 = vpop.xlane.xlu0 %908
        %v910 = vsel %vm743, %v906, 0.0
        %911 = vadd.xlane.f32.xlu0 %v910
        %v912 = vpop.xlane.xlu0 %911
        %v913 = vrcp.pop %v909
        %v914 = vmul.f32 %v904, %v913
        %v915 = vrcp.pop %v912
        %v916 = vmul.f32 %v906, %v915
        %917 = vrot.lane.b32.xlu0 %v732, 64
        %v918 = vpop.permute.xlu0 %917
        %v921 = vsel %vm743, %v914, 0
        %923 = vmatprep.subr.mxu0 0.0
        %924 = vmatpush1.msra.mxu0 %v918
        %925 = vmatprep.subr.mxu0 0.0
        %926 = vmatpush1.msra.mxu0 0.0
        %927 = vmatprep.subr.mxu0 0.0
        %928 = vmatpush1.msra.mxu0 0.0
        %929 = vmatprep.subr.mxu0 0.0
        %930 = vmatpush1.msra.mxu0 0.0
        %931 = vmatprep.subr.mxu0 0.0
        %932 = vmatpush1.msra.mxu0 0.0
        %933 = vmatprep.subr.mxu0 0.0
        %934 = vmatpush1.msra.mxu0 0.0
        %935 = vmatprep.subr.mxu0 0.0
        %936 = vmatpush1.msra.mxu0 0.0
        %937 = vmatprep.subr.mxu0 0.0
        %938 = vmatpush1.msra.mxu0 0.0
        %939 = vmatprep.subr.mxu0 0.0
        %940 = vmatpush1.msra.mxu0 0.0
        %941 = vmatprep.subr.mxu0 0.0
        %942 = vmatpush1.msra.mxu0 0.0
        %943 = vmatprep.subr.mxu0 0.0
        %944 = vmatpush1.msra.mxu0 0.0
        %945 = vmatprep.subr.mxu0 0.0
        %946 = vmatpush1.msra.mxu0 0.0
        %947 = vmatprep.subr.mxu0 0.0
        %948 = vmatpush1.msra.mxu0 0.0
        %949 = vmatprep.subr.mxu0 0.0
        %950 = vmatpush1.msra.mxu0 0.0
        %951 = vmatprep.subr.mxu0 0.0
        %952 = vmatpush1.msra.mxu0 0.0
        %953 = vmatprep.subr.mxu0 0.0
        %954 = vmatpush1.msra.mxu0 0.0
        %955 = vmatprep.subr.mxu0 0.0
        %956 = vmatpush1.msra.mxu0 0.0
        %957 = vmatprep.subr.mxu0 0.0
        %958 = vmatpush1.msra.mxu0 0.0
        %959 = vmatprep.subr.mxu0 0.0
        %960 = vmatpush1.msra.mxu0 0.0
        %961 = vmatprep.subr.mxu0 0.0
        %962 = vmatpush1.msra.mxu0 0.0
        %963 = vmatprep.subr.mxu0 0.0
        %964 = vmatpush1.msra.mxu0 0.0
        %965 = vmatprep.subr.mxu0 0.0
        %966 = vmatpush1.msra.mxu0 0.0
        %967 = vmatprep.subr.mxu0 0.0
        %968 = vmatpush1.msra.mxu0 0.0
        %969 = vmatprep.subr.mxu0 0.0
        %970 = vmatpush1.msra.mxu0 0.0
        %971 = vmatprep.subr.mxu0 0.0
        %972 = vmatpush1.msra.mxu0 0.0
        %973 = vmatprep.subr.mxu0 0.0
        %974 = vmatpush1.msra.mxu0 0.0
        %975 = vmatprep.subr.mxu0 0.0
        %976 = vmatpush1.msra.mxu0 0.0
        %977 = vmatprep.subr.mxu0 0.0
        %978 = vmatpush1.msra.mxu0 0.0
        %979 = vmatprep.subr.mxu0 0.0
        %980 = vmatpush1.msra.mxu0 0.0
        %981 = vmatprep.subr.mxu0 0.0
        %982 = vmatpush1.msra.mxu0 0.0
        %983 = vmatprep.subr.mxu0 0.0
        %984 = vmatpush1.msra.mxu0 0.0
        %985 = vmatprep.subr.mxu0 0.0
        %986 = vmatpush1.msra.mxu0 0.0
        %987 = vmatprep.mubr.f32.mxu0 0.0
        %988 = vmatmul.mubr.f32.gmra.mrb[0].mxu0 %v921
        %v989 = vpop.f32.mrb[0].mxu0
        %v990 = vadd.f32 0.0, %v989
        %v991 = vpop.f32.mrb[0].mxu0
        %992 = vdwg.mxu0
        %993 = vrot.lane.b32.xlu0 %v737, 64
        %v994 = vpop.permute.xlu0 %993
        %v997 = vsel %vm743, %v916, 0
        %999 = vmatprep.subr.mxu0 0.0
        %1000 = vmatpush1.msra.mxu0 %v994
        %1001 = vmatprep.subr.mxu0 0.0
        %1002 = vmatpush1.msra.mxu0 0.0
        %1003 = vmatprep.subr.mxu0 0.0
        %1004 = vmatpush1.msra.mxu0 0.0
        %1005 = vmatprep.subr.mxu0 0.0
        %1006 = vmatpush1.msra.mxu0 0.0
        %1007 = vmatprep.subr.mxu0 0.0
        %1008 = vmatpush1.msra.mxu0 0.0
        %1009 = vmatprep.subr.mxu0 0.0
        %1010 = vmatpush1.msra.mxu0 0.0
        %1011 = vmatprep.subr.mxu0 0.0
        %1012 = vmatpush1.msra.mxu0 0.0
        %1013 = vmatprep.subr.mxu0 0.0
        %1014 = vmatpush1.msra.mxu0 0.0
        %1015 = vmatprep.subr.mxu0 0.0
        %1016 = vmatpush1.msra.mxu0 0.0
        %1017 = vmatprep.subr.mxu0 0.0
        %1018 = vmatpush1.msra.mxu0 0.0
        %1019 = vmatprep.subr.mxu0 0.0
        %1020 = vmatpush1.msra.mxu0 0.0
        %1021 = vmatprep.subr.mxu0 0.0
        %1022 = vmatpush1.msra.mxu0 0.0
        %1023 = vmatprep.subr.mxu0 0.0
        %1024 = vmatpush1.msra.mxu0 0.0
        %1025 = vmatprep.subr.mxu0 0.0
        %1026 = vmatpush1.msra.mxu0 0.0
        %1027 = vmatprep.subr.mxu0 0.0
        %1028 = vmatpush1.msra.mxu0 0.0
        %1029 = vmatprep.subr.mxu0 0.0
        %1030 = vmatpush1.msra.mxu0 0.0
        %1031 = vmatprep.subr.mxu0 0.0
        %1032 = vmatpush1.msra.mxu0 0.0
        %1033 = vmatprep.subr.mxu0 0.0
        %1034 = vmatpush1.msra.mxu0 0.0
        %1035 = vmatprep.subr.mxu0 0.0
        %1036 = vmatpush1.msra.mxu0 0.0
        %1037 = vmatprep.subr.mxu0 0.0
        %1038 = vmatpush1.msra.mxu0 0.0
        %1039 = vmatprep.subr.mxu0 0.0
        %1040 = vmatpush1.msra.mxu0 0.0
        %1041 = vmatprep.subr.mxu0 0.0
        %1042 = vmatpush1.msra.mxu0 0.0
        %1043 = vmatprep.subr.mxu0 0.0
        %1044 = vmatpush1.msra.mxu0 0.0
        %1045 = vmatprep.subr.mxu0 0.0
        %1046 = vmatpush1.msra.mxu0 0.0
        %1047 = vmatprep.subr.mxu0 0.0
        %1048 = vmatpush1.msra.mxu0 0.0
        %1049 = vmatprep.subr.mxu0 0.0
        %1050 = vmatpush1.msra.mxu0 0.0
        %1051 = vmatprep.subr.mxu0 0.0
        %1052 = vmatpush1.msra.mxu0 0.0
        %1053 = vmatprep.subr.mxu0 0.0
        %1054 = vmatpush1.msra.mxu0 0.0
        %1055 = vmatprep.subr.mxu0 0.0
        %1056 = vmatpush1.msra.mxu0 0.0
        %1057 = vmatprep.subr.mxu0 0.0
        %1058 = vmatpush1.msra.mxu0 0.0
        %1059 = vmatprep.subr.mxu0 0.0
        %1060 = vmatpush1.msra.mxu0 0.0
        %1061 = vmatprep.subr.mxu0 0.0
        %1062 = vmatpush1.msra.mxu0 0.0
        %1063 = vmatprep.mubr.f32.mxu0 0.0
        %1064 = vmatmul.mubr.f32.gmra.mrb[0].mxu0 %v997
        %v1065 = vpop.f32.mrb[0].mxu0
        %v1066 = vadd.f32 0.0, %v1065
        %v1067 = vpop.f32.mrb[0].mxu0
        %1068 = vdwg.mxu0
        %1069 = vrot.lane.b32.xlu0 %v732, 120
        %v1070 = vpop.permute.xlu0 %1069
        %1071 = vrot.lane.b32.xlu0 %v732, 88
        %v1072 = vpop.permute.xlu0 %1071
        %v1073 = vsel %vm743, %v1070, 0
        %v1075 = vsel %vm743, %v1072, 0
        %1077 = vmatprep.subr.mxu0 0.0
        %1078 = vmatpush1.xpose.msra.mxu0 %v1075
        %1079 = vmatprep.subr.mxu0 0.0
        %1080 = vmatpush1.xpose.msra.mxu0 0.0
        %1081 = vmatprep.subr.mxu0 0.0
        %1082 = vmatpush1.xpose.msra.mxu0 0.0
        %1083 = vmatprep.subr.mxu0 0.0
        %1084 = vmatpush1.xpose.msra.mxu0 0.0
        %1085 = vmatprep.subr.mxu0 0.0
        %1086 = vmatpush1.xpose.msra.mxu0 0.0
        %1087 = vmatprep.subr.mxu0 0.0
        %1088 = vmatpush1.xpose.msra.mxu0 0.0
        %1089 = vmatprep.subr.mxu0 0.0
        %1090 = vmatpush1.xpose.msra.mxu0 0.0
        %1091 = vmatprep.subr.mxu0 0.0
        %1092 = vmatpush1.xpose.msra.mxu0 0.0
        %1093 = vmatprep.subr.mxu0 0.0
        %1094 = vmatpush1.xpose.msra.mxu0 0.0
        %1095 = vmatprep.subr.mxu0 0.0
        %1096 = vmatpush1.xpose.msra.mxu0 0.0
        %1097 = vmatprep.subr.mxu0 0.0
        %1098 = vmatpush1.xpose.msra.mxu0 0.0
        %1099 = vmatprep.subr.mxu0 0.0
        %1100 = vmatpush1.xpose.msra.mxu0 0.0
        %1101 = vmatprep.subr.mxu0 0.0
        %1102 = vmatpush1.xpose.msra.mxu0 0.0
        %1103 = vmatprep.subr.mxu0 0.0
        %1104 = vmatpush1.xpose.msra.mxu0 0.0
        %1105 = vmatprep.subr.mxu0 0.0
        %1106 = vmatpush1.xpose.msra.mxu0 0.0
        %1107 = vmatprep.subr.mxu0 0.0
        %1108 = vmatpush1.xpose.msra.mxu0 0.0
        %1109 = vmatprep.subr.mxu0 0.0
        %1110 = vmatpush1.xpose.msra.mxu0 0.0
        %1111 = vmatprep.subr.mxu0 0.0
        %1112 = vmatpush1.xpose.msra.mxu0 0.0
        %1113 = vmatprep.subr.mxu0 0.0
        %1114 = vmatpush1.xpose.msra.mxu0 0.0
        %1115 = vmatprep.subr.mxu0 0.0
        %1116 = vmatpush1.xpose.msra.mxu0 0.0
        %1117 = vmatprep.subr.mxu0 0.0
        %1118 = vmatpush1.xpose.msra.mxu0 0.0
        %1119 = vmatprep.subr.mxu0 0.0
        %1120 = vmatpush1.xpose.msra.mxu0 0.0
        %1121 = vmatprep.subr.mxu0 0.0
        %1122 = vmatpush1.xpose.msra.mxu0 0.0
        %1123 = vmatprep.subr.mxu0 0.0
        %1124 = vmatpush1.xpose.msra.mxu0 0.0
        %1125 = vmatprep.subr.mxu0 0.0
        %1126 = vmatpush1.xpose.msra.mxu0 0.0
        %1127 = vmatprep.subr.mxu0 0.0
        %1128 = vmatpush1.xpose.msra.mxu0 0.0
        %1129 = vmatprep.subr.mxu0 0.0
        %1130 = vmatpush1.xpose.msra.mxu0 0.0
        %1131 = vmatprep.subr.mxu0 0.0
        %1132 = vmatpush1.xpose.msra.mxu0 0.0
        %1133 = vmatprep.subr.mxu0 0.0
        %1134 = vmatpush1.xpose.msra.mxu0 0.0
        %1135 = vmatprep.subr.mxu0 0.0
        %1136 = vmatpush1.xpose.msra.mxu0 0.0
        %1137 = vmatprep.subr.mxu0 0.0
        %1138 = vmatpush1.xpose.msra.mxu0 0.0
        %1139 = vmatprep.subr.mxu0 0.0
        %1140 = vmatpush1.xpose.msra.mxu0 0.0
        %1141 = vmatprep.mubr.f32.mxu0 0.0
        %1142 = vmatmul.mubr.f32.gmra.mrb[0].mxu0 %v1073
        %v1143 = vpop.f32.mrb[0].mxu0
        %v1144 = vadd.f32 0.0, %v1143
        %v1145 = vpop.f32.mrb[0].mxu0
        %1146 = vdwg.mxu0
        %1147 = vrot.lane.b32.xlu0 %v737, 120
        %v1148 = vpop.permute.xlu0 %1147
        %1149 = vrot.lane.b32.xlu0 %v737, 88
        %v1150 = vpop.permute.xlu0 %1149
        %v1151 = vsel %vm743, %v1148, 0
        %v1153 = vsel %vm743, %v1150, 0
        %1155 = vmatprep.subr.mxu0 0.0
        %1156 = vmatpush1.xpose.msra.mxu0 %v1153
        %1157 = vmatprep.subr.mxu0 0.0
        %1158 = vmatpush1.xpose.msra.mxu0 0.0
        %1159 = vmatprep.subr.mxu0 0.0
        %1160 = vmatpush1.xpose.msra.mxu0 0.0
        %1161 = vmatprep.subr.mxu0 0.0
        %1162 = vmatpush1.xpose.msra.mxu0 0.0
        %1163 = vmatprep.subr.mxu0 0.0
        %1164 = vmatpush1.xpose.msra.mxu0 0.0
        %1165 = vmatprep.subr.mxu0 0.0
        %1166 = vmatpush1.xpose.msra.mxu0 0.0
        %1167 = vmatprep.subr.mxu0 0.0
        %1168 = vmatpush1.xpose.msra.mxu0 0.0
        %1169 = vmatprep.subr.mxu0 0.0
        %1170 = vmatpush1.xpose.msra.mxu0 0.0
        %1171 = vmatprep.subr.mxu0 0.0
        %1172 = vmatpush1.xpose.msra.mxu0 0.0
        %1173 = vmatprep.subr.mxu0 0.0
        %1174 = vmatpush1.xpose.msra.mxu0 0.0
        %1175 = vmatprep.subr.mxu0 0.0
        %1176 = vmatpush1.xpose.msra.mxu0 0.0
        %1177 = vmatprep.subr.mxu0 0.0
        %1178 = vmatpush1.xpose.msra.mxu0 0.0
        %1179 = vmatprep.subr.mxu0 0.0
        %1180 = vmatpush1.xpose.msra.mxu0 0.0
        %1181 = vmatprep.subr.mxu0 0.0
        %1182 = vmatpush1.xpose.msra.mxu0 0.0
        %1183 = vmatprep.subr.mxu0 0.0
        %1184 = vmatpush1.xpose.msra.mxu0 0.0
        %1185 = vmatprep.subr.mxu0 0.0
        %1186 = vmatpush1.xpose.msra.mxu0 0.0
        %1187 = vmatprep.subr.mxu0 0.0
        %1188 = vmatpush1.xpose.msra.mxu0 0.0
        %1189 = vmatprep.subr.mxu0 0.0
        %1190 = vmatpush1.xpose.msra.mxu0 0.0
        %1191 = vmatprep.subr.mxu0 0.0
        %1192 = vmatpush1.xpose.msra.mxu0 0.0
        %1193 = vmatprep.subr.mxu0 0.0
        %1194 = vmatpush1.xpose.msra.mxu0 0.0
        %1195 = vmatprep.subr.mxu0 0.0
        %1196 = vmatpush1.xpose.msra.mxu0 0.0
        %1197 = vmatprep.subr.mxu0 0.0
        %1198 = vmatpush1.xpose.msra.mxu0 0.0
        %1199 = vmatprep.subr.mxu0 0.0
        %1200 = vmatpush1.xpose.msra.mxu0 0.0
        %1201 = vmatprep.subr.mxu0 0.0
        %1202 = vmatpush1.xpose.msra.mxu0 0.0
        %1203 = vmatprep.subr.mxu0 0.0
        %1204 = vmatpush1.xpose.msra.mxu0 0.0
        %1205 = vmatprep.subr.mxu0 0.0
        %1206 = vmatpush1.xpose.msra.mxu0 0.0
        %1207 = vmatprep.subr.mxu0 0.0
        %1208 = vmatpush1.xpose.msra.mxu0 0.0
        %1209 = vmatprep.subr.mxu0 0.0
        %1210 = vmatpush1.xpose.msra.mxu0 0.0
        %1211 = vmatprep.subr.mxu0 0.0
        %1212 = vmatpush1.xpose.msra.mxu0 0.0
        %1213 = vmatprep.subr.mxu0 0.0
        %1214 = vmatpush1.xpose.msra.mxu0 0.0
        %1215 = vmatprep.subr.mxu0 0.0
        %1216 = vmatpush1.xpose.msra.mxu0 0.0
        %1217 = vmatprep.subr.mxu0 0.0
        %1218 = vmatpush1.xpose.msra.mxu0 0.0
        %1219 = vmatprep.mubr.f32.mxu0 0.0
        %1220 = vmatmul.mubr.f32.gmra.mrb[0].mxu0 %v1151
        %v1221 = vpop.f32.mrb[0].mxu0
        %v1222 = vadd.f32 0.0, %v1221
        %v1223 = vpop.f32.mrb[0].mxu0
        %1224 = vdwg.mxu0
        %v1225 = vsel %vm743, %v1144, -inf
        %1226 = vmax.xlane.f32.xlu0 %v1225
        %v1227 = vpop.xlane.xlu0 %1226
        %v1228 = vsel %vm743, %v1222, -inf
        %1229 = vmax.xlane.f32.xlu0 %v1228
        %v1230 = vpop.xlane.xlu0 %1229
        %v1231 = vsub.f32 %v1144, %v1227
        %v1232 = vsub.f32 %v1222, %v1230
        %v1233 = vmul.f32 %v1231, 1.442695
        %v1234 = vpow.pop %v1233
        %v1235 = vmul.f32 %v1232, 1.442695
        %v1236 = vpow.pop %v1235
        %v1237 = vsel %vm743, %v1234, 0.0
        %1238 = vadd.xlane.f32.xlu0 %v1237
        %v1239 = vpop.xlane.xlu0 %1238
        %v1240 = vsel %vm743, %v1236, 0.0
        %1241 = vadd.xlane.f32.xlu0 %v1240
        %v1242 = vpop.xlane.xlu0 %1241
        %v1243 = vrcp.pop %v1239
        %v1244 = vmul.f32 %v1234, %v1243
        %v1245 = vrcp.pop %v1242
        %v1246 = vmul.f32 %v1236, %v1245
        %1247 = vrot.lane.b32.xlu0 %v732, 56
        %v1248 = vpop.permute.xlu0 %1247
        %v1251 = vsel %vm743, %v1244, 0
        %1253 = vmatprep.subr.mxu0 0.0
        %1254 = vmatpush1.msra.mxu0 %v1248
        %1255 = vmatprep.subr.mxu0 0.0
        %1256 = vmatpush1.msra.mxu0 0.0
        %1257 = vmatprep.subr.mxu0 0.0
        %1258 = vmatpush1.msra.mxu0 0.0
        %1259 = vmatprep.subr.mxu0 0.0
        %1260 = vmatpush1.msra.mxu0 0.0
        %1261 = vmatprep.subr.mxu0 0.0
        %1262 = vmatpush1.msra.mxu0 0.0
        %1263 = vmatprep.subr.mxu0 0.0
        %1264 = vmatpush1.msra.mxu0 0.0
        %1265 = vmatprep.subr.mxu0 0.0
        %1266 = vmatpush1.msra.mxu0 0.0
        %1267 = vmatprep.subr.mxu0 0.0
        %1268 = vmatpush1.msra.mxu0 0.0
        %1269 = vmatprep.subr.mxu0 0.0
        %1270 = vmatpush1.msra.mxu0 0.0
        %1271 = vmatprep.subr.mxu0 0.0
        %1272 = vmatpush1.msra.mxu0 0.0
        %1273 = vmatprep.subr.mxu0 0.0
        %1274 = vmatpush1.msra.mxu0 0.0
        %1275 = vmatprep.subr.mxu0 0.0
        %1276 = vmatpush1.msra.mxu0 0.0
        %1277 = vmatprep.subr.mxu0 0.0
        %1278 = vmatpush1.msra.mxu0 0.0
        %1279 = vmatprep.subr.mxu0 0.0
        %1280 = vmatpush1.msra.mxu0 0.0
        %1281 = vmatprep.subr.mxu0 0.0
        %1282 = vmatpush1.msra.mxu0 0.0
        %1283 = vmatprep.subr.mxu0 0.0
        %1284 = vmatpush1.msra.mxu0 0.0
        %1285 = vmatprep.subr.mxu0 0.0
        %1286 = vmatpush1.msra.mxu0 0.0
        %1287 = vmatprep.subr.mxu0 0.0
        %1288 = vmatpush1.msra.mxu0 0.0
        %1289 = vmatprep.subr.mxu0 0.0
        %1290 = vmatpush1.msra.mxu0 0.0
        %1291 = vmatprep.subr.mxu0 0.0
        %1292 = vmatpush1.msra.mxu0 0.0
        %1293 = vmatprep.subr.mxu0 0.0
        %1294 = vmatpush1.msra.mxu0 0.0
        %1295 = vmatprep.subr.mxu0 0.0
        %1296 = vmatpush1.msra.mxu0 0.0
        %1297 = vmatprep.subr.mxu0 0.0
        %1298 = vmatpush1.msra.mxu0 0.0
        %1299 = vmatprep.subr.mxu0 0.0
        %1300 = vmatpush1.msra.mxu0 0.0
        %1301 = vmatprep.subr.mxu0 0.0
        %1302 = vmatpush1.msra.mxu0 0.0
        %1303 = vmatprep.subr.mxu0 0.0
        %1304 = vmatpush1.msra.mxu0 0.0
        %1305 = vmatprep.subr.mxu0 0.0
        %1306 = vmatpush1.msra.mxu0 0.0
        %1307 = vmatprep.subr.mxu0 0.0
        %1308 = vmatpush1.msra.mxu0 0.0
        %1309 = vmatprep.subr.mxu0 0.0
        %1310 = vmatpush1.msra.mxu0 0.0
        %1311 = vmatprep.subr.mxu0 0.0
        %1312 = vmatpush1.msra.mxu0 0.0
        %1313 = vmatprep.subr.mxu0 0.0
        %1314 = vmatpush1.msra.mxu0 0.0
        %1315 = vmatprep.subr.mxu0 0.0
        %1316 = vmatpush1.msra.mxu0 0.0
        %1317 = vmatprep.mubr.f32.mxu0 0.0
        %1318 = vmatmul.mubr.f32.gmra.mrb[0].mxu0 %v1251
        %v1319 = vpop.f32.mrb[0].mxu0
        %v1320 = vadd.f32 0.0, %v1319
        %v1321 = vpop.f32.mrb[0].mxu0
        %1322 = vdwg.mxu0
        %1323 = vrot.lane.b32.xlu0 %v737, 56
        %v1324 = vpop.permute.xlu0 %1323
        %v1327 = vsel %vm743, %v1246, 0
        %1329 = vmatprep.subr.mxu0 0.0
        %1330 = vmatpush1.msra.mxu0 %v1324
        %1331 = vmatprep.subr.mxu0 0.0
        %1332 = vmatpush1.msra.mxu0 0.0
        %1333 = vmatprep.subr.mxu0 0.0
        %1334 = vmatpush1.msra.mxu0 0.0
        %1335 = vmatprep.subr.mxu0 0.0
        %1336 = vmatpush1.msra.mxu0 0.0
        %1337 = vmatprep.subr.mxu0 0.0
        %1338 = vmatpush1.msra.mxu0 0.0
        %1339 = vmatprep.subr.mxu0 0.0
        %1340 = vmatpush1.msra.mxu0 0.0
        %1341 = vmatprep.subr.mxu0 0.0
        %1342 = vmatpush1.msra.mxu0 0.0
        %1343 = vmatprep.subr.mxu0 0.0
        %1344 = vmatpush1.msra.mxu0 0.0
        %1345 = vmatprep.subr.mxu0 0.0
        %1346 = vmatpush1.msra.mxu0 0.0
        %1347 = vmatprep.subr.mxu0 0.0
        %1348 = vmatpush1.msra.mxu0 0.0
        %1349 = vmatprep.subr.mxu0 0.0
        %1350 = vmatpush1.msra.mxu0 0.0
        %1351 = vmatprep.subr.mxu0 0.0
        %1352 = vmatpush1.msra.mxu0 0.0
        %1353 = vmatprep.subr.mxu0 0.0
        %1354 = vmatpush1.msra.mxu0 0.0
        %1355 = vmatprep.subr.mxu0 0.0
        %1356 = vmatpush1.msra.mxu0 0.0
        %1357 = vmatprep.subr.mxu0 0.0
        %1358 = vmatpush1.msra.mxu0 0.0
        %1359 = vmatprep.subr.mxu0 0.0
        %1360 = vmatpush1.msra.mxu0 0.0
        %1361 = vmatprep.subr.mxu0 0.0
        %1362 = vmatpush1.msra.mxu0 0.0
        %1363 = vmatprep.subr.mxu0 0.0
        %1364 = vmatpush1.msra.mxu0 0.0
        %1365 = vmatprep.subr.mxu0 0.0
        %1366 = vmatpush1.msra.mxu0 0.0
        %1367 = vmatprep.subr.mxu0 0.0
        %1368 = vmatpush1.msra.mxu0 0.0
        %1369 = vmatprep.subr.mxu0 0.0
        %1370 = vmatpush1.msra.mxu0 0.0
        %1371 = vmatprep.subr.mxu0 0.0
        %1372 = vmatpush1.msra.mxu0 0.0
        %1373 = vmatprep.subr.mxu0 0.0
        %1374 = vmatpush1.msra.mxu0 0.0
        %1375 = vmatprep.subr.mxu0 0.0
        %1376 = vmatpush1.msra.mxu0 0.0
        %1377 = vmatprep.subr.mxu0 0.0
        %1378 = vmatpush1.msra.mxu0 0.0
        %1379 = vmatprep.subr.mxu0 0.0
        %1380 = vmatpush1.msra.mxu0 0.0
        %1381 = vmatprep.subr.mxu0 0.0
        %1382 = vmatpush1.msra.mxu0 0.0
        %1383 = vmatprep.subr.mxu0 0.0
        %1384 = vmatpush1.msra.mxu0 0.0
        %1385 = vmatprep.subr.mxu0 0.0
        %1386 = vmatpush1.msra.mxu0 0.0
        %1387 = vmatprep.subr.mxu0 0.0
        %1388 = vmatpush1.msra.mxu0 0.0
        %1389 = vmatprep.subr.mxu0 0.0
        %1390 = vmatpush1.msra.mxu0 0.0
        %1391 = vmatprep.subr.mxu0 0.0
        %1392 = vmatpush1.msra.mxu0 0.0
        %1393 = vmatprep.mubr.f32.mxu0 0.0
        %1394 = vmatmul.mubr.f32.gmra.mrb[0].mxu0 %v1327
        %v1395 = vpop.f32.mrb[0].mxu0
        %v1396 = vadd.f32 0.0, %v1395
        %v1397 = vpop.f32.mrb[0].mxu0
        %1398 = vdwg.mxu0
        %1399 = vrot.lane.b32.xlu0 %v732, 112
        %v1400 = vpop.permute.xlu0 %1399
        %1401 = vrot.lane.b32.xlu0 %v732, 80
        %v1402 = vpop.permute.xlu0 %1401
        %v1403 = vsel %vm743, %v1400, 0
        %v1405 = vsel %vm743, %v1402, 0
        %1407 = vmatprep.subr.mxu0 0.0
        %1408 = vmatpush1.xpose.msra.mxu0 %v1405
        %1409 = vmatprep.subr.mxu0 0.0
        %1410 = vmatpush1.xpose.msra.mxu0 0.0
        %1411 = vmatprep.subr.mxu0 0.0
        %1412 = vmatpush1.xpose.msra.mxu0 0.0
        %1413 = vmatprep.subr.mxu0 0.0
        %1414 = vmatpush1.xpose.msra.mxu0 0.0
        %1415 = vmatprep.subr.mxu0 0.0
        %1416 = vmatpush1.xpose.msra.mxu0 0.0
        %1417 = vmatprep.subr.mxu0 0.0
        %1418 = vmatpush1.xpose.msra.mxu0 0.0
        %1419 = vmatprep.subr.mxu0 0.0
        %1420 = vmatpush1.xpose.msra.mxu0 0.0
        %1421 = vmatprep.subr.mxu0 0.0
        %1422 = vmatpush1.xpose.msra.mxu0 0.0
        %1423 = vmatprep.subr.mxu0 0.0
        %1424 = vmatpush1.xpose.msra.mxu0 0.0
        %1425 = vmatprep.subr.mxu0 0.0
        %1426 = vmatpush1.xpose.msra.mxu0 0.0
        %1427 = vmatprep.subr.mxu0 0.0
        %1428 = vmatpush1.xpose.msra.mxu0 0.0
        %1429 = vmatprep.subr.mxu0 0.0
        %1430 = vmatpush1.xpose.msra.mxu0 0.0
        %1431 = vmatprep.subr.mxu0 0.0
        %1432 = vmatpush1.xpose.msra.mxu0 0.0
        %1433 = vmatprep.subr.mxu0 0.0
        %1434 = vmatpush1.xpose.msra.mxu0 0.0
        %1435 = vmatprep.subr.mxu0 0.0
        %1436 = vmatpush1.xpose.msra.mxu0 0.0
        %1437 = vmatprep.subr.mxu0 0.0
        %1438 = vmatpush1.xpose.msra.mxu0 0.0
        %1439 = vmatprep.subr.mxu0 0.0
        %1440 = vmatpush1.xpose.msra.mxu0 0.0
        %1441 = vmatprep.subr.mxu0 0.0
        %1442 = vmatpush1.xpose.msra.mxu0 0.0
        %1443 = vmatprep.subr.mxu0 0.0
        %1444 = vmatpush1.xpose.msra.mxu0 0.0
        %1445 = vmatprep.subr.mxu0 0.0
        %1446 = vmatpush1.xpose.msra.mxu0 0.0
        %1447 = vmatprep.subr.mxu0 0.0
        %1448 = vmatpush1.xpose.msra.mxu0 0.0
        %1449 = vmatprep.subr.mxu0 0.0
        %1450 = vmatpush1.xpose.msra.mxu0 0.0
        %1451 = vmatprep.subr.mxu0 0.0
        %1452 = vmatpush1.xpose.msra.mxu0 0.0
        %1453 = vmatprep.subr.mxu0 0.0
        %1454 = vmatpush1.xpose.msra.mxu0 0.0
        %1455 = vmatprep.subr.mxu0 0.0
        %1456 = vmatpush1.xpose.msra.mxu0 0.0
        %1457 = vmatprep.subr.mxu0 0.0
        %1458 = vmatpush1.xpose.msra.mxu0 0.0
        %1459 = vmatprep.subr.mxu0 0.0
        %1460 = vmatpush1.xpose.msra.mxu0 0.0
        %1461 = vmatprep.subr.mxu0 0.0
        %1462 = vmatpush1.xpose.msra.mxu0 0.0
        %1463 = vmatprep.subr.mxu0 0.0
        %1464 = vmatpush1.xpose.msra.mxu0 0.0
        %1465 = vmatprep.subr.mxu0 0.0
        %1466 = vmatpush1.xpose.msra.mxu0 0.0
        %1467 = vmatprep.subr.mxu0 0.0
        %1468 = vmatpush1.xpose.msra.mxu0 0.0
        %1469 = vmatprep.subr.mxu0 0.0
        %1470 = vmatpush1.xpose.msra.mxu0 0.0
        %1471 = vmatprep.mubr.f32.mxu0 0.0
        %1472 = vmatmul.mubr.f32.gmra.mrb[0].mxu0 %v1403
        %v1473 = vpop.f32.mrb[0].mxu0
        %v1474 = vadd.f32 0.0, %v1473
        %v1475 = vpop.f32.mrb[0].mxu0
        %1476 = vdwg.mxu0
        %1477 = vrot.lane.b32.xlu0 %v737, 112
        %v1478 = vpop.permute.xlu0 %1477
        %1479 = vrot.lane.b32.xlu0 %v737, 80
        %v1480 = vpop.permute.xlu0 %1479
        %v1481 = vsel %vm743, %v1478, 0
        %v1483 = vsel %vm743, %v1480, 0
        %1485 = vmatprep.subr.mxu0 0.0
        %1486 = vmatpush1.xpose.msra.mxu0 %v1483
        %1487 = vmatprep.subr.mxu0 0.0
        %1488 = vmatpush1.xpose.msra.mxu0 0.0
        %1489 = vmatprep.subr.mxu0 0.0
        %1490 = vmatpush1.xpose.msra.mxu0 0.0
        %1491 = vmatprep.subr.mxu0 0.0
        %1492 = vmatpush1.xpose.msra.mxu0 0.0
        %1493 = vmatprep.subr.mxu0 0.0
        %1494 = vmatpush1.xpose.msra.mxu0 0.0
        %1495 = vmatprep.subr.mxu0 0.0
        %1496 = vmatpush1.xpose.msra.mxu0 0.0
        %1497 = vmatprep.subr.mxu0 0.0
        %1498 = vmatpush1.xpose.msra.mxu0 0.0
        %1499 = vmatprep.subr.mxu0 0.0
        %1500 = vmatpush1.xpose.msra.mxu0 0.0
        %1501 = vmatprep.subr.mxu0 0.0
        %1502 = vmatpush1.xpose.msra.mxu0 0.0
        %1503 = vmatprep.subr.mxu0 0.0
        %1504 = vmatpush1.xpose.msra.mxu0 0.0
        %1505 = vmatprep.subr.mxu0 0.0
        %1506 = vmatpush1.xpose.msra.mxu0 0.0
        %1507 = vmatprep.subr.mxu0 0.0
        %1508 = vmatpush1.xpose.msra.mxu0 0.0
        %1509 = vmatprep.subr.mxu0 0.0
        %1510 = vmatpush1.xpose.msra.mxu0 0.0
        %1511 = vmatprep.subr.mxu0 0.0
        %1512 = vmatpush1.xpose.msra.mxu0 0.0
        %1513 = vmatprep.subr.mxu0 0.0
        %1514 = vmatpush1.xpose.msra.mxu0 0.0
        %1515 = vmatprep.subr.mxu0 0.0
        %1516 = vmatpush1.xpose.msra.mxu0 0.0
        %1517 = vmatprep.subr.mxu0 0.0
        %1518 = vmatpush1.xpose.msra.mxu0 0.0
        %1519 = vmatprep.subr.mxu0 0.0
        %1520 = vmatpush1.xpose.msra.mxu0 0.0
        %1521 = vmatprep.subr.mxu0 0.0
        %1522 = vmatpush1.xpose.msra.mxu0 0.0
        %1523 = vmatprep.subr.mxu0 0.0
        %1524 = vmatpush1.xpose.msra.mxu0 0.0
        %1525 = vmatprep.subr.mxu0 0.0
        %1526 = vmatpush1.xpose.msra.mxu0 0.0
        %1527 = vmatprep.subr.mxu0 0.0
        %1528 = vmatpush1.xpose.msra.mxu0 0.0
        %1529 = vmatprep.subr.mxu0 0.0
        %1530 = vmatpush1.xpose.msra.mxu0 0.0
        %1531 = vmatprep.subr.mxu0 0.0
        %1532 = vmatpush1.xpose.msra.mxu0 0.0
        %1533 = vmatprep.subr.mxu0 0.0
        %1534 = vmatpush1.xpose.msra.mxu0 0.0
        %1535 = vmatprep.subr.mxu0 0.0
        %1536 = vmatpush1.xpose.msra.mxu0 0.0
        %1537 = vmatprep.subr.mxu0 0.0
        %1538 = vmatpush1.xpose.msra.mxu0 0.0
        %1539 = vmatprep.subr.mxu0 0.0
        %1540 = vmatpush1.xpose.msra.mxu0 0.0
        %1541 = vmatprep.subr.mxu0 0.0
        %1542 = vmatpush1.xpose.msra.mxu0 0.0
        %1543 = vmatprep.subr.mxu0 0.0
        %1544 = vmatpush1.xpose.msra.mxu0 0.0
        %1545 = vmatprep.subr.mxu0 0.0
        %1546 = vmatpush1.xpose.msra.mxu0 0.0
        %1547 = vmatprep.subr.mxu0 0.0
        %1548 = vmatpush1.xpose.msra.mxu0 0.0
        %1549 = vmatprep.mubr.f32.mxu0 0.0
        %1550 = vmatmul.mubr.f32.gmra.mrb[0].mxu0 %v1481
        %v1551 = vpop.f32.mrb[0].mxu0
        %v1552 = vadd.f32 0.0, %v1551
        %v1553 = vpop.f32.mrb[0].mxu0
        %1554 = vdwg.mxu0
        %v1555 = vsel %vm743, %v1474, -inf
        %1556 = vmax.xlane.f32.xlu0 %v1555
        %v1557 = vpop.xlane.xlu0 %1556
        %v1558 = vsel %vm743, %v1552, -inf
        %1559 = vmax.xlane.f32.xlu0 %v1558
        %v1560 = vpop.xlane.xlu0 %1559
        %v1561 = vsub.f32 %v1474, %v1557
        %v1562 = vsub.f32 %v1552, %v1560
        %v1563 = vmul.f32 %v1561, 1.442695
        %v1564 = vpow.pop %v1563
        %v1565 = vmul.f32 %v1562, 1.442695
        %v1566 = vpow.pop %v1565
        %v1567 = vsel %vm743, %v1564, 0.0
        %1568 = vadd.xlane.f32.xlu0 %v1567
        %v1569 = vpop.xlane.xlu0 %1568
        %v1570 = vsel %vm743, %v1566, 0.0
        %1571 = vadd.xlane.f32.xlu0 %v1570
        %v1572 = vpop.xlane.xlu0 %1571
        %v1573 = vrcp.pop %v1569
        %v1574 = vmul.f32 %v1564, %v1573
        %v1575 = vrcp.pop %v1572
        %v1576 = vmul.f32 %v1566, %v1575
        %1577 = vrot.lane.b32.xlu0 %v732, 48
        %v1578 = vpop.permute.xlu0 %1577
        %v1581 = vsel %vm743, %v1574, 0
        %1583 = vmatprep.subr.mxu0 0.0
        %1584 = vmatpush1.msra.mxu0 %v1578
        %1585 = vmatprep.subr.mxu0 0.0
        %1586 = vmatpush1.msra.mxu0 0.0
        %1587 = vmatprep.subr.mxu0 0.0
        %1588 = vmatpush1.msra.mxu0 0.0
        %1589 = vmatprep.subr.mxu0 0.0
        %1590 = vmatpush1.msra.mxu0 0.0
        %1591 = vmatprep.subr.mxu0 0.0
        %1592 = vmatpush1.msra.mxu0 0.0
        %1593 = vmatprep.subr.mxu0 0.0
        %1594 = vmatpush1.msra.mxu0 0.0
        %1595 = vmatprep.subr.mxu0 0.0
        %1596 = vmatpush1.msra.mxu0 0.0
        %1597 = vmatprep.subr.mxu0 0.0
        %1598 = vmatpush1.msra.mxu0 0.0
        %1599 = vmatprep.subr.mxu0 0.0
        %1600 = vmatpush1.msra.mxu0 0.0
        %1601 = vmatprep.subr.mxu0 0.0
        %1602 = vmatpush1.msra.mxu0 0.0
        %1603 = vmatprep.subr.mxu0 0.0
        %1604 = vmatpush1.msra.mxu0 0.0
        %1605 = vmatprep.subr.mxu0 0.0
        %1606 = vmatpush1.msra.mxu0 0.0
        %1607 = vmatprep.subr.mxu0 0.0
        %1608 = vmatpush1.msra.mxu0 0.0
        %1609 = vmatprep.subr.mxu0 0.0
        %1610 = vmatpush1.msra.mxu0 0.0
        %1611 = vmatprep.subr.mxu0 0.0
        %1612 = vmatpush1.msra.mxu0 0.0
        %1613 = vmatprep.subr.mxu0 0.0
        %1614 = vmatpush1.msra.mxu0 0.0
        %1615 = vmatprep.subr.mxu0 0.0
        %1616 = vmatpush1.msra.mxu0 0.0
        %1617 = vmatprep.subr.mxu0 0.0
        %1618 = vmatpush1.msra.mxu0 0.0
        %1619 = vmatprep.subr.mxu0 0.0
        %1620 = vmatpush1.msra.mxu0 0.0
        %1621 = vmatprep.subr.mxu0 0.0
        %1622 = vmatpush1.msra.mxu0 0.0
        %1623 = vmatprep.subr.mxu0 0.0
        %1624 = vmatpush1.msra.mxu0 0.0
        %1625 = vmatprep.subr.mxu0 0.0
        %1626 = vmatpush1.msra.mxu0 0.0
        %1627 = vmatprep.subr.mxu0 0.0
        %1628 = vmatpush1.msra.mxu0 0.0
        %1629 = vmatprep.subr.mxu0 0.0
        %1630 = vmatpush1.msra.mxu0 0.0
        %1631 = vmatprep.subr.mxu0 0.0
        %1632 = vmatpush1.msra.mxu0 0.0
        %1633 = vmatprep.subr.mxu0 0.0
        %1634 = vmatpush1.msra.mxu0 0.0
        %1635 = vmatprep.subr.mxu0 0.0
        %1636 = vmatpush1.msra.mxu0 0.0
        %1637 = vmatprep.subr.mxu0 0.0
        %1638 = vmatpush1.msra.mxu0 0.0
        %1639 = vmatprep.subr.mxu0 0.0
        %1640 = vmatpush1.msra.mxu0 0.0
        %1641 = vmatprep.subr.mxu0 0.0
        %1642 = vmatpush1.msra.mxu0 0.0
        %1643 = vmatprep.subr.mxu0 0.0
        %1644 = vmatpush1.msra.mxu0 0.0
        %1645 = vmatprep.subr.mxu0 0.0
        %1646 = vmatpush1.msra.mxu0 0.0
        %1647 = vmatprep.mubr.f32.mxu0 0.0
        %1648 = vmatmul.mubr.f32.gmra.mrb[0].mxu0 %v1581
        %v1649 = vpop.f32.mrb[0].mxu0
        %v1650 = vadd.f32 0.0, %v1649
        %v1651 = vpop.f32.mrb[0].mxu0
        %1652 = vdwg.mxu0
        %1653 = vrot.lane.b32.xlu0 %v737, 48
        %v1654 = vpop.permute.xlu0 %1653
        %v1657 = vsel %vm743, %v1576, 0
        %1659 = vmatprep.subr.mxu0 0.0
        %1660 = vmatpush1.msra.mxu0 %v1654
        %1661 = vmatprep.subr.mxu0 0.0
        %1662 = vmatpush1.msra.mxu0 0.0
        %1663 = vmatprep.subr.mxu0 0.0
        %1664 = vmatpush1.msra.mxu0 0.0
        %1665 = vmatprep.subr.mxu0 0.0
        %1666 = vmatpush1.msra.mxu0 0.0
        %1667 = vmatprep.subr.mxu0 0.0
        %1668 = vmatpush1.msra.mxu0 0.0
        %1669 = vmatprep.subr.mxu0 0.0
        %1670 = vmatpush1.msra.mxu0 0.0
        %1671 = vmatprep.subr.mxu0 0.0
        %1672 = vmatpush1.msra.mxu0 0.0
        %1673 = vmatprep.subr.mxu0 0.0
        %1674 = vmatpush1.msra.mxu0 0.0
        %1675 = vmatprep.subr.mxu0 0.0
        %1676 = vmatpush1.msra.mxu0 0.0
        %1677 = vmatprep.subr.mxu0 0.0
        %1678 = vmatpush1.msra.mxu0 0.0
        %1679 = vmatprep.subr.mxu0 0.0
        %1680 = vmatpush1.msra.mxu0 0.0
        %1681 = vmatprep.subr.mxu0 0.0
        %1682 = vmatpush1.msra.mxu0 0.0
        %1683 = vmatprep.subr.mxu0 0.0
        %1684 = vmatpush1.msra.mxu0 0.0
        %1685 = vmatprep.subr.mxu0 0.0
        %1686 = vmatpush1.msra.mxu0 0.0
        %1687 = vmatprep.subr.mxu0 0.0
        %1688 = vmatpush1.msra.mxu0 0.0
        %1689 = vmatprep.subr.mxu0 0.0
        %1690 = vmatpush1.msra.mxu0 0.0
        %1691 = vmatprep.subr.mxu0 0.0
        %1692 = vmatpush1.msra.mxu0 0.0
        %1693 = vmatprep.subr.mxu0 0.0
        %1694 = vmatpush1.msra.mxu0 0.0
        %1695 = vmatprep.subr.mxu0 0.0
        %1696 = vmatpush1.msra.mxu0 0.0
        %1697 = vmatprep.subr.mxu0 0.0
        %1698 = vmatpush1.msra.mxu0 0.0
        %1699 = vmatprep.subr.mxu0 0.0
        %1700 = vmatpush1.msra.mxu0 0.0
        %1701 = vmatprep.subr.mxu0 0.0
        %1702 = vmatpush1.msra.mxu0 0.0
        %1703 = vmatprep.subr.mxu0 0.0
        %1704 = vmatpush1.msra.mxu0 0.0
        %1705 = vmatprep.subr.mxu0 0.0
        %1706 = vmatpush1.msra.mxu0 0.0
        %1707 = vmatprep.subr.mxu0 0.0
        %1708 = vmatpush1.msra.mxu0 0.0
        %1709 = vmatprep.subr.mxu0 0.0
        %1710 = vmatpush1.msra.mxu0 0.0
        %1711 = vmatprep.subr.mxu0 0.0
        %1712 = vmatpush1.msra.mxu0 0.0
        %1713 = vmatprep.subr.mxu0 0.0
        %1714 = vmatpush1.msra.mxu0 0.0
        %1715 = vmatprep.subr.mxu0 0.0
        %1716 = vmatpush1.msra.mxu0 0.0
        %1717 = vmatprep.subr.mxu0 0.0
        %1718 = vmatpush1.msra.mxu0 0.0
        %1719 = vmatprep.subr.mxu0 0.0
        %1720 = vmatpush1.msra.mxu0 0.0
        %1721 = vmatprep.subr.mxu0 0.0
        %1722 = vmatpush1.msra.mxu0 0.0
        %1723 = vmatprep.mubr.f32.mxu0 0.0
        %1724 = vmatmul.mubr.f32.gmra.mrb[0].mxu0 %v1657
        %v1725 = vpop.f32.mrb[0].mxu0
        %v1726 = vadd.f32 0.0, %v1725
        %v1727 = vpop.f32.mrb[0].mxu0
        %1728 = vdwg.mxu0
        %1729 = vrot.lane.b32.xlu0 %v732, 104
        %v1730 = vpop.permute.xlu0 %1729
        %1731 = vrot.lane.b32.xlu0 %v732, 72
        %v1732 = vpop.permute.xlu0 %1731
        %v1733 = vsel %vm743, %v1730, 0
        %v1735 = vsel %vm743, %v1732, 0
        %1737 = vmatprep.subr.mxu0 0.0
        %1738 = vmatpush1.xpose.msra.mxu0 %v1735
        %1739 = vmatprep.subr.mxu0 0.0
        %1740 = vmatpush1.xpose.msra.mxu0 0.0
        %1741 = vmatprep.subr.mxu0 0.0
        %1742 = vmatpush1.xpose.msra.mxu0 0.0
        %1743 = vmatprep.subr.mxu0 0.0
        %1744 = vmatpush1.xpose.msra.mxu0 0.0
        %1745 = vmatprep.subr.mxu0 0.0
        %1746 = vmatpush1.xpose.msra.mxu0 0.0
        %1747 = vmatprep.subr.mxu0 0.0
        %1748 = vmatpush1.xpose.msra.mxu0 0.0
        %1749 = vmatprep.subr.mxu0 0.0
        %1750 = vmatpush1.xpose.msra.mxu0 0.0
        %1751 = vmatprep.subr.mxu0 0.0
        %1752 = vmatpush1.xpose.msra.mxu0 0.0
        %1753 = vmatprep.subr.mxu0 0.0
        %1754 = vmatpush1.xpose.msra.mxu0 0.0
        %1755 = vmatprep.subr.mxu0 0.0
        %1756 = vmatpush1.xpose.msra.mxu0 0.0
        %1757 = vmatprep.subr.mxu0 0.0
        %1758 = vmatpush1.xpose.msra.mxu0 0.0
        %1759 = vmatprep.subr.mxu0 0.0
        %1760 = vmatpush1.xpose.msra.mxu0 0.0
        %1761 = vmatprep.subr.mxu0 0.0
        %1762 = vmatpush1.xpose.msra.mxu0 0.0
        %1763 = vmatprep.subr.mxu0 0.0
        %1764 = vmatpush1.xpose.msra.mxu0 0.0
        %1765 = vmatprep.subr.mxu0 0.0
        %1766 = vmatpush1.xpose.msra.mxu0 0.0
        %1767 = vmatprep.subr.mxu0 0.0
        %1768 = vmatpush1.xpose.msra.mxu0 0.0
        %1769 = vmatprep.subr.mxu0 0.0
        %1770 = vmatpush1.xpose.msra.mxu0 0.0
        %1771 = vmatprep.subr.mxu0 0.0
        %1772 = vmatpush1.xpose.msra.mxu0 0.0
        %1773 = vmatprep.subr.mxu0 0.0
        %1774 = vmatpush1.xpose.msra.mxu0 0.0
        %1775 = vmatprep.subr.mxu0 0.0
        %1776 = vmatpush1.xpose.msra.mxu0 0.0
        %1777 = vmatprep.subr.mxu0 0.0
        %1778 = vmatpush1.xpose.msra.mxu0 0.0
        %1779 = vmatprep.subr.mxu0 0.0
        %1780 = vmatpush1.xpose.msra.mxu0 0.0
        %1781 = vmatprep.subr.mxu0 0.0
        %1782 = vmatpush1.xpose.msra.mxu0 0.0
        %1783 = vmatprep.subr.mxu0 0.0
        %1784 = vmatpush1.xpose.msra.mxu0 0.0
        %1785 = vmatprep.subr.mxu0 0.0
        %1786 = vmatpush1.xpose.msra.mxu0 0.0
        %1787 = vmatprep.subr.mxu0 0.0
        %1788 = vmatpush1.xpose.msra.mxu0 0.0
        %1789 = vmatprep.subr.mxu0 0.0
        %1790 = vmatpush1.xpose.msra.mxu0 0.0
        %1791 = vmatprep.subr.mxu0 0.0
        %1792 = vmatpush1.xpose.msra.mxu0 0.0
        %1793 = vmatprep.subr.mxu0 0.0
        %1794 = vmatpush1.xpose.msra.mxu0 0.0
        %1795 = vmatprep.subr.mxu0 0.0
        %1796 = vmatpush1.xpose.msra.mxu0 0.0
        %1797 = vmatprep.subr.mxu0 0.0
        %1798 = vmatpush1.xpose.msra.mxu0 0.0
        %1799 = vmatprep.subr.mxu0 0.0
        %1800 = vmatpush1.xpose.msra.mxu0 0.0
        %1801 = vmatprep.mubr.f32.mxu0 0.0
        %1802 = vmatmul.mubr.f32.gmra.mrb[0].mxu0 %v1733
        %v1803 = vpop.f32.mrb[0].mxu0
        %v1804 = vadd.f32 0.0, %v1803
        %v1805 = vpop.f32.mrb[0].mxu0
        %1806 = vdwg.mxu0
        %1807 = vrot.lane.b32.xlu0 %v737, 104
        %v1808 = vpop.permute.xlu0 %1807
        %1809 = vrot.lane.b32.xlu0 %v737, 72
        %v1810 = vpop.permute.xlu0 %1809
        %v1811 = vsel %vm743, %v1808, 0
        %v1813 = vsel %vm743, %v1810, 0
        %1815 = vmatprep.subr.mxu0 0.0
        %1816 = vmatpush1.xpose.msra.mxu0 %v1813
        %1817 = vmatprep.subr.mxu0 0.0
        %1818 = vmatpush1.xpose.msra.mxu0 0.0
        %1819 = vmatprep.subr.mxu0 0.0
        %1820 = vmatpush1.xpose.msra.mxu0 0.0
        %1821 = vmatprep.subr.mxu0 0.0
        %1822 = vmatpush1.xpose.msra.mxu0 0.0
        %1823 = vmatprep.subr.mxu0 0.0
        %1824 = vmatpush1.xpose.msra.mxu0 0.0
        %1825 = vmatprep.subr.mxu0 0.0
        %1826 = vmatpush1.xpose.msra.mxu0 0.0
        %1827 = vmatprep.subr.mxu0 0.0
        %1828 = vmatpush1.xpose.msra.mxu0 0.0
        %1829 = vmatprep.subr.mxu0 0.0
        %1830 = vmatpush1.xpose.msra.mxu0 0.0
        %1831 = vmatprep.subr.mxu0 0.0
        %1832 = vmatpush1.xpose.msra.mxu0 0.0
        %1833 = vmatprep.subr.mxu0 0.0
        %1834 = vmatpush1.xpose.msra.mxu0 0.0
        %1835 = vmatprep.subr.mxu0 0.0
        %1836 = vmatpush1.xpose.msra.mxu0 0.0
        %1837 = vmatprep.subr.mxu0 0.0
        %1838 = vmatpush1.xpose.msra.mxu0 0.0
        %1839 = vmatprep.subr.mxu0 0.0
        %1840 = vmatpush1.xpose.msra.mxu0 0.0
        %1841 = vmatprep.subr.mxu0 0.0
        %1842 = vmatpush1.xpose.msra.mxu0 0.0
        %1843 = vmatprep.subr.mxu0 0.0
        %1844 = vmatpush1.xpose.msra.mxu0 0.0
        %1845 = vmatprep.subr.mxu0 0.0
        %1846 = vmatpush1.xpose.msra.mxu0 0.0
        %1847 = vmatprep.subr.mxu0 0.0
        %1848 = vmatpush1.xpose.msra.mxu0 0.0
        %1849 = vmatprep.subr.mxu0 0.0
        %1850 = vmatpush1.xpose.msra.mxu0 0.0
        %1851 = vmatprep.subr.mxu0 0.0
        %1852 = vmatpush1.xpose.msra.mxu0 0.0
        %1853 = vmatprep.subr.mxu0 0.0
        %1854 = vmatpush1.xpose.msra.mxu0 0.0
        %1855 = vmatprep.subr.mxu0 0.0
        %1856 = vmatpush1.xpose.msra.mxu0 0.0
        %1857 = vmatprep.subr.mxu0 0.0
        %1858 = vmatpush1.xpose.msra.mxu0 0.0
        %1859 = vmatprep.subr.mxu0 0.0
        %1860 = vmatpush1.xpose.msra.mxu0 0.0
        %1861 = vmatprep.subr.mxu0 0.0
        %1862 = vmatpush1.xpose.msra.mxu0 0.0
        %1863 = vmatprep.subr.mxu0 0.0
        %1864 = vmatpush1.xpose.msra.mxu0 0.0
        %1865 = vmatprep.subr.mxu0 0.0
        %1866 = vmatpush1.xpose.msra.mxu0 0.0
        %1867 = vmatprep.subr.mxu0 0.0
        %1868 = vmatpush1.xpose.msra.mxu0 0.0
        %1869 = vmatprep.subr.mxu0 0.0
        %1870 = vmatpush1.xpose.msra.mxu0 0.0
        %1871 = vmatprep.subr.mxu0 0.0
        %1872 = vmatpush1.xpose.msra.mxu0 0.0
        %1873 = vmatprep.subr.mxu0 0.0
        %1874 = vmatpush1.xpose.msra.mxu0 0.0
        %1875 = vmatprep.subr.mxu0 0.0
        %1876 = vmatpush1.xpose.msra.mxu0 0.0
        %1877 = vmatprep.subr.mxu0 0.0
        %1878 = vmatpush1.xpose.msra.mxu0 0.0
        %1879 = vmatprep.mubr.f32.mxu0 0.0
        %1880 = vmatmul.mubr.f32.gmra.mrb[0].mxu0 %v1811
        %v1881 = vpop.f32.mrb[0].mxu0
        %v1882 = vadd.f32 0.0, %v1881
        %v1883 = vpop.f32.mrb[0].mxu0
        %1884 = vdwg.mxu0
        %v1885 = vsel %vm743, %v1804, -inf
        %1886 = vmax.xlane.f32.xlu0 %v1885
        %v1887 = vpop.xlane.xlu0 %1886
        %v1888 = vsel %vm743, %v1882, -inf
        %1889 = vmax.xlane.f32.xlu0 %v1888
        %v1890 = vpop.xlane.xlu0 %1889
        %v1891 = vsub.f32 %v1804, %v1887
        %v1892 = vsub.f32 %v1882, %v1890
        %v1893 = vmul.f32 %v1891, 1.442695
        %v1894 = vpow.pop %v1893
        %v1895 = vmul.f32 %v1892, 1.442695
        %v1896 = vpow.pop %v1895
        %v1897 = vsel %vm743, %v1894, 0.0
        %1898 = vadd.xlane.f32.xlu0 %v1897
        %v1899 = vpop.xlane.xlu0 %1898
        %v1900 = vsel %vm743, %v1896, 0.0
        %1901 = vadd.xlane.f32.xlu0 %v1900
        %v1902 = vpop.xlane.xlu0 %1901
        %v1903 = vrcp.pop %v1899
        %v1904 = vmul.f32 %v1894, %v1903
        %v1905 = vrcp.pop %v1902
        %v1906 = vmul.f32 %v1896, %v1905
        %1907 = vrot.lane.b32.xlu0 %v732, 40
        %v1908 = vpop.permute.xlu0 %1907
        %v1911 = vsel %vm743, %v1904, 0
        %1913 = vmatprep.subr.mxu0 0.0
        %1914 = vmatpush1.msra.mxu0 %v1908
        %1915 = vmatprep.subr.mxu0 0.0
        %1916 = vmatpush1.msra.mxu0 0.0
        %1917 = vmatprep.subr.mxu0 0.0
        %1918 = vmatpush1.msra.mxu0 0.0
        %1919 = vmatprep.subr.mxu0 0.0
        %1920 = vmatpush1.msra.mxu0 0.0
        %1921 = vmatprep.subr.mxu0 0.0
        %1922 = vmatpush1.msra.mxu0 0.0
        %1923 = vmatprep.subr.mxu0 0.0
        %1924 = vmatpush1.msra.mxu0 0.0
        %1925 = vmatprep.subr.mxu0 0.0
        %1926 = vmatpush1.msra.mxu0 0.0
        %1927 = vmatprep.subr.mxu0 0.0
        %1928 = vmatpush1.msra.mxu0 0.0
        %1929 = vmatprep.subr.mxu0 0.0
        %1930 = vmatpush1.msra.mxu0 0.0
        %1931 = vmatprep.subr.mxu0 0.0
        %1932 = vmatpush1.msra.mxu0 0.0
        %1933 = vmatprep.subr.mxu0 0.0
        %1934 = vmatpush1.msra.mxu0 0.0
        %1935 = vmatprep.subr.mxu0 0.0
        %1936 = vmatpush1.msra.mxu0 0.0
        %1937 = vmatprep.subr.mxu0 0.0
        %1938 = vmatpush1.msra.mxu0 0.0
        %1939 = vmatprep.subr.mxu0 0.0
        %1940 = vmatpush1.msra.mxu0 0.0
        %1941 = vmatprep.subr.mxu0 0.0
        %1942 = vmatpush1.msra.mxu0 0.0
        %1943 = vmatprep.subr.mxu0 0.0
        %1944 = vmatpush1.msra.mxu0 0.0
        %1945 = vmatprep.subr.mxu0 0.0
        %1946 = vmatpush1.msra.mxu0 0.0
        %1947 = vmatprep.subr.mxu0 0.0
        %1948 = vmatpush1.msra.mxu0 0.0
        %1949 = vmatprep.subr.mxu0 0.0
        %1950 = vmatpush1.msra.mxu0 0.0
        %1951 = vmatprep.subr.mxu0 0.0
        %1952 = vmatpush1.msra.mxu0 0.0
        %1953 = vmatprep.subr.mxu0 0.0
        %1954 = vmatpush1.msra.mxu0 0.0
        %1955 = vmatprep.subr.mxu0 0.0
        %1956 = vmatpush1.msra.mxu0 0.0
        %1957 = vmatprep.subr.mxu0 0.0
        %1958 = vmatpush1.msra.mxu0 0.0
        %1959 = vmatprep.subr.mxu0 0.0
        %1960 = vmatpush1.msra.mxu0 0.0
        %1961 = vmatprep.subr.mxu0 0.0
        %1962 = vmatpush1.msra.mxu0 0.0
        %1963 = vmatprep.subr.mxu0 0.0
        %1964 = vmatpush1.msra.mxu0 0.0
        %1965 = vmatprep.subr.mxu0 0.0
        %1966 = vmatpush1.msra.mxu0 0.0
        %1967 = vmatprep.subr.mxu0 0.0
        %1968 = vmatpush1.msra.mxu0 0.0
        %1969 = vmatprep.subr.mxu0 0.0
        %1970 = vmatpush1.msra.mxu0 0.0
        %1971 = vmatprep.subr.mxu0 0.0
        %1972 = vmatpush1.msra.mxu0 0.0
        %1973 = vmatprep.subr.mxu0 0.0
        %1974 = vmatpush1.msra.mxu0 0.0
        %1975 = vmatprep.subr.mxu0 0.0
        %1976 = vmatpush1.msra.mxu0 0.0
        %1977 = vmatprep.mubr.f32.mxu0 0.0
        %1978 = vmatmul.mubr.f32.gmra.mrb[0].mxu0 %v1911
        %v1979 = vpop.f32.mrb[0].mxu0
        %v1980 = vadd.f32 0.0, %v1979
        %v1981 = vpop.f32.mrb[0].mxu0
        %1982 = vdwg.mxu0
        %1983 = vrot.lane.b32.xlu0 %v737, 40
        %v1984 = vpop.permute.xlu0 %1983
        %v1987 = vsel %vm743, %v1906, 0
        %1989 = vmatprep.subr.mxu0 0.0
        %1990 = vmatpush1.msra.mxu0 %v1984
        %1991 = vmatprep.subr.mxu0 0.0
        %1992 = vmatpush1.msra.mxu0 0.0
        %1993 = vmatprep.subr.mxu0 0.0
        %1994 = vmatpush1.msra.mxu0 0.0
        %1995 = vmatprep.subr.mxu0 0.0
        %1996 = vmatpush1.msra.mxu0 0.0
        %1997 = vmatprep.subr.mxu0 0.0
        %1998 = vmatpush1.msra.mxu0 0.0
        %1999 = vmatprep.subr.mxu0 0.0
        %2000 = vmatpush1.msra.mxu0 0.0
        %2001 = vmatprep.subr.mxu0 0.0
        %2002 = vmatpush1.msra.mxu0 0.0
        %2003 = vmatprep.subr.mxu0 0.0
        %2004 = vmatpush1.msra.mxu0 0.0
        %2005 = vmatprep.subr.mxu0 0.0
        %2006 = vmatpush1.msra.mxu0 0.0
        %2007 = vmatprep.subr.mxu0 0.0
        %2008 = vmatpush1.msra.mxu0 0.0
        %2009 = vmatprep.subr.mxu0 0.0
        %2010 = vmatpush1.msra.mxu0 0.0
        %2011 = vmatprep.subr.mxu0 0.0
        %2012 = vmatpush1.msra.mxu0 0.0
        %2013 = vmatprep.subr.mxu0 0.0
        %2014 = vmatpush1.msra.mxu0 0.0
        %2015 = vmatprep.subr.mxu0 0.0
        %2016 = vmatpush1.msra.mxu0 0.0
        %2017 = vmatprep.subr.mxu0 0.0
        %2018 = vmatpush1.msra.mxu0 0.0
        %2019 = vmatprep.subr.mxu0 0.0
        %2020 = vmatpush1.msra.mxu0 0.0
        %2021 = vmatprep.subr.mxu0 0.0
        %2022 = vmatpush1.msra.mxu0 0.0
        %2023 = vmatprep.subr.mxu0 0.0
        %2024 = vmatpush1.msra.mxu0 0.0
        %2025 = vmatprep.subr.mxu0 0.0
        %2026 = vmatpush1.msra.mxu0 0.0
        %2027 = vmatprep.subr.mxu0 0.0
        %2028 = vmatpush1.msra.mxu0 0.0
        %2029 = vmatprep.subr.mxu0 0.0
        %2030 = vmatpush1.msra.mxu0 0.0
        %2031 = vmatprep.subr.mxu0 0.0
        %2032 = vmatpush1.msra.mxu0 0.0
        %2033 = vmatprep.subr.mxu0 0.0
        %2034 = vmatpush1.msra.mxu0 0.0
        %2035 = vmatprep.subr.mxu0 0.0
        %2036 = vmatpush1.msra.mxu0 0.0
        %2037 = vmatprep.subr.mxu0 0.0
        %2038 = vmatpush1.msra.mxu0 0.0
        %2039 = vmatprep.subr.mxu0 0.0
        %2040 = vmatpush1.msra.mxu0 0.0
        %2041 = vmatprep.subr.mxu0 0.0
        %2042 = vmatpush1.msra.mxu0 0.0
        %2043 = vmatprep.subr.mxu0 0.0
        %2044 = vmatpush1.msra.mxu0 0.0
        %2045 = vmatprep.subr.mxu0 0.0
        %2046 = vmatpush1.msra.mxu0 0.0
        %2047 = vmatprep.subr.mxu0 0.0
        %2048 = vmatpush1.msra.mxu0 0.0
        %2049 = vmatprep.subr.mxu0 0.0
        %2050 = vmatpush1.msra.mxu0 0.0
        %2051 = vmatprep.subr.mxu0 0.0
        %2052 = vmatpush1.msra.mxu0 0.0
        %2053 = vmatprep.mubr.f32.mxu0 0.0
        %2054 = vmatmul.mubr.f32.gmra.mrb[0].mxu0 %v1987
        %v2055 = vpop.f32.mrb[0].mxu0
        %v2056 = vadd.f32 0.0, %v2055
        %v2057 = vpop.f32.mrb[0].mxu0
        %2058 = vdwg.mxu0
        %2061 = vrot.lane.b32.xlu0 %v1320, 8
        %v2062 = vpop.permute.xlu0 %2061
        %2063 = vrot.lane.b32.xlu0 %v1396, 8
        %v2064 = vpop.permute.xlu0 %2063
        %2069 = vrot.lane.b32.xlu0 %v1650, 16
        %v2070 = vpop.permute.xlu0 %2069
        %2071 = vrot.lane.b32.xlu0 %v1726, 16
        %v2072 = vpop.permute.xlu0 %2071
        %2077 = vrot.lane.b32.xlu0 %v1980, 24
        %v2078 = vpop.permute.xlu0 %2077
        %2079 = vrot.lane.b32.xlu0 %v2056, 24
        %v2080 = vpop.permute.xlu0 %2079
        %v2083 = vsel %vm743, %v990, %v2062
        %v2084 = vsel %vm743, %v1066, %v2064
        %vm2085 = vcmask 130048
        %v2086 = vsel %vm2085, %v2083, %v2070
        %v2087 = vsel %vm2085, %v2084, %v2072
        %vm2088 = vcmask 195584
        %v2089 = vsel %vm2088, %v2086, %v2078
        %v2090 = vsel %vm2088, %v2087, %v2080
        %v2091 = vld [vmem:[%s526] sm:$0xff]
        %v2092 = vld [vmem:[%s526 + $0x8] sm:$0xff]
        %v2093 = vld [vmem:[%s526 + $0x10] sm:$0xff]
        %v2094 = vld [vmem:[%s526 + $0x18] sm:$0xff]
        %v2095 = vlaneseq
        %v2096 = vshrl.u32 %v2095, 7
        %v2097 = vsub.s32 0, %v2096
        %v2098 = vrot.slane %v646, %v2097
        %v2100 = vsel %vm658, %v2089, 0
        %v2103 = vsel %vm658, %v2090, 0
        %2105 = vmatprep.subr.mxu0 0.0
        %2106 = vmatpush1.msra.mxu0 %v2091
        %2107 = vmatprep.subr.mxu0 0.0
        %2108 = vmatpush1.msra.mxu0 %v2092
        %2109 = vmatprep.subr.mxu0 0.0
        %2110 = vmatpush1.msra.mxu0 %v2093
        %2111 = vmatprep.subr.mxu0 0.0
        %2112 = vmatpush1.msra.mxu0 %v2094
        %2113 = vmatprep.subr.mxu0 0.0
        %2114 = vmatpush1.msra.mxu0 0.0
        %2115 = vmatprep.subr.mxu0 0.0
        %2116 = vmatpush1.msra.mxu0 0.0
        %2117 = vmatprep.subr.mxu0 0.0
        %2118 = vmatpush1.msra.mxu0 0.0
        %2119 = vmatprep.subr.mxu0 0.0
        %2120 = vmatpush1.msra.mxu0 0.0
        %2121 = vmatprep.subr.mxu0 0.0
        %2122 = vmatpush1.msra.mxu0 0.0
        %2123 = vmatprep.subr.mxu0 0.0
        %2124 = vmatpush1.msra.mxu0 0.0
        %2125 = vmatprep.subr.mxu0 0.0
        %2126 = vmatpush1.msra.mxu0 0.0
        %2127 = vmatprep.subr.mxu0 0.0
        %2128 = vmatpush1.msra.mxu0 0.0
        %2129 = vmatprep.subr.mxu0 0.0
        %2130 = vmatpush1.msra.mxu0 0.0
        %2131 = vmatprep.subr.mxu0 0.0
        %2132 = vmatpush1.msra.mxu0 0.0
        %2133 = vmatprep.subr.mxu0 0.0
        %2134 = vmatpush1.msra.mxu0 0.0
        %2135 = vmatprep.subr.mxu0 0.0
        %2136 = vmatpush1.msra.mxu0 0.0
        %2137 = vmatprep.subr.mxu0 0.0
        %2138 = vmatpush1.msra.mxu0 0.0
        %2139 = vmatprep.subr.mxu0 0.0
        %2140 = vmatpush1.msra.mxu0 0.0
        %2141 = vmatprep.subr.mxu0 0.0
        %2142 = vmatpush1.msra.mxu0 0.0
        %2143 = vmatprep.subr.mxu0 0.0
        %2144 = vmatpush1.msra.mxu0 0.0
        %2145 = vmatprep.subr.mxu0 0.0
        %2146 = vmatpush1.msra.mxu0 0.0
        %2147 = vmatprep.subr.mxu0 0.0
        %2148 = vmatpush1.msra.mxu0 0.0
        %2149 = vmatprep.subr.mxu0 0.0
        %2150 = vmatpush1.msra.mxu0 0.0
        %2151 = vmatprep.subr.mxu0 0.0
        %2152 = vmatpush1.msra.mxu0 0.0
        %2153 = vmatprep.subr.mxu0 0.0
        %2154 = vmatpush1.msra.mxu0 0.0
        %2155 = vmatprep.subr.mxu0 0.0
        %2156 = vmatpush1.msra.mxu0 0.0
        %2157 = vmatprep.subr.mxu0 0.0
        %2158 = vmatpush1.msra.mxu0 0.0
        %2159 = vmatprep.subr.mxu0 0.0
        %2160 = vmatpush1.msra.mxu0 0.0
        %2161 = vmatprep.subr.mxu0 0.0
        %2162 = vmatpush1.msra.mxu0 0.0
        %2163 = vmatprep.subr.mxu0 0.0
        %2164 = vmatpush1.msra.mxu0 0.0
        %2165 = vmatprep.subr.mxu0 0.0
        %2166 = vmatpush1.msra.mxu0 0.0
        %2167 = vmatprep.subr.mxu0 0.0
        %2168 = vmatpush1.msra.mxu0 0.0
        %2169 = vmatprep.mubr.f32.mxu0 0.0
        %2170 = vmatmul.mubr.f32.gmra.mrb[0].mxu0 %v2100
        %v2171 = vpop.f32.mrb[0].mxu0
        %v2172 = vadd.f32 %v2098, %v2171
        %v2173 = vpop.f32.mrb[0].mxu0
        %2174 = vmatprep.mubr.f32.mxu0 0.0
        %2175 = vmatmul.mubr.f32.gmra.mrb[0].mxu0 %v2103
        %v2176 = vpop.f32.mrb[0].mxu0
        %v2177 = vadd.f32 %v2098, %v2176
        %v2178 = vpop.f32.mrb[0].mxu0
        %2179 = vdwg.mxu0
        %v2180 = vadd.f32 %v644, %v2172
        %v2181 = vadd.f32 %v645, %v2177
        %v2182 = vsel %vm658, %v2180, 0.0
        %2183 = vadd.xlane.f32.xlu0 %v2182
        %v2184 = vpop.xlane.xlu0 %2183
        %v2185 = vsel %vm658, %v2181, 0.0
        %2186 = vadd.xlane.f32.xlu0 %v2185
        %v2187 = vpop.xlane.xlu0 %2186
        %v2188 = vrcp.pop 32.0
        %v2189 = vmul.f32 %v2184, %v2188
        %v2190 = vmul.f32 %v2187, %v2188
        %v2191 = vsub.f32 %v2180, %v2189
        %v2192 = vsub.f32 %v2181, %v2190
        %v2193 = vmul.f32 %v2191, %v2191
        %v2194 = vmul.f32 %v2192, %v2192
        %v2195 = vsel %vm658, %v2193, 0.0
        %2196 = vadd.xlane.f32.xlu0 %v2195
        %v2197 = vpop.xlane.xlu0 %2196
        %v2198 = vsel %vm658, %v2194, 0.0
        %2199 = vadd.xlane.f32.xlu0 %v2198
        %v2200 = vpop.xlane.xlu0 %2199
        %v2201 = vmul.f32 %v2197, %v2188
        %v2202 = vmul.f32 %v2200, %v2188
        %v2203 = vadd.f32 %v2201, 1e-05
        %v2204 = vadd.f32 %v2202, 1e-05
        %v2205 = vrsqrt.pop %v2203
        %v2206 = vrsqrt.pop %v2204
        %v2207 = vmul.f32 %v2191, %v2205
        %v2208 = vmul.f32 %v2192, %v2206
        %v2209 = vlaneseq
        %v2210 = vshrl.u32 %v2209, 7
        %v2211 = vsub.s32 1, %v2210
        %v2212 = vrot.slane %v646, %v2211
        %v2213 = vmul.f32 %v2207, %v2212
        %v2214 = vmul.f32 %v2208, %v2212
        %v2215 = vlaneseq
        %v2216 = vshrl.u32 %v2215, 7
        %v2217 = vsub.s32 2, %v2216
        %v2218 = vrot.slane %v646, %v2217
        %v2219 = vadd.f32 %v2213, %v2218
        %v2220 = vadd.f32 %v2214, %v2218
        %v2221 = vld [vmem:[%s531] sm:$0xff]
        %v2222 = vld [vmem:[%s531 + $0x8] sm:$0xff]
        %v2223 = vld [vmem:[%s531 + $0x10] sm:$0xff]
        %v2224 = vld [vmem:[%s531 + $0x18] sm:$0xff]
        %v2225 = vld [vmem:[%s534] sm:$0x1]
        %v2227 = vlaneseq
        %v2228 = vshrl.u32 %v2227, 7
        %v2229 = vsub.s32 0, %v2228
        %v2230 = vrot.slane %v2225, %v2229
        %v2233 = vsel %vm658, %v2219, 0
        %v2236 = vsel %vm658, %v2220, 0
        %2238 = vmatprep.subr.mxu0 0.0
        %2239 = vmatpush1.msra.mxu0 %v2221
        %2240 = vmatprep.subr.mxu0 0.0
        %2241 = vmatpush1.msra.mxu0 %v2222
        %2242 = vmatprep.subr.mxu0 0.0
        %2243 = vmatpush1.msra.mxu0 %v2223
        %2244 = vmatprep.subr.mxu0 0.0
        %2245 = vmatpush1.msra.mxu0 %v2224
        %2246 = vmatprep.subr.mxu0 0.0
        %2247 = vmatpush1.msra.mxu0 0.0
        %2248 = vmatprep.subr.mxu0 0.0
        %2249 = vmatpush1.msra.mxu0 0.0
        %2250 = vmatprep.subr.mxu0 0.0
        %2251 = vmatpush1.msra.mxu0 0.0
        %2252 = vmatprep.subr.mxu0 0.0
        %2253 = vmatpush1.msra.mxu0 0.0
        %2254 = vmatprep.subr.mxu0 0.0
        %2255 = vmatpush1.msra.mxu0 0.0
        %2256 = vmatprep.subr.mxu0 0.0
        %2257 = vmatpush1.msra.mxu0 0.0
        %2258 = vmatprep.subr.mxu0 0.0
        %2259 = vmatpush1.msra.mxu0 0.0
        %2260 = vmatprep.subr.mxu0 0.0
        %2261 = vmatpush1.msra.mxu0 0.0
        %2262 = vmatprep.subr.mxu0 0.0
        %2263 = vmatpush1.msra.mxu0 0.0
        %2264 = vmatprep.subr.mxu0 0.0
        %2265 = vmatpush1.msra.mxu0 0.0
        %2266 = vmatprep.subr.mxu0 0.0
        %2267 = vmatpush1.msra.mxu0 0.0
        %2268 = vmatprep.subr.mxu0 0.0
        %2269 = vmatpush1.msra.mxu0 0.0
        %2270 = vmatprep.subr.mxu0 0.0
        %2271 = vmatpush1.msra.mxu0 0.0
        %2272 = vmatprep.subr.mxu0 0.0
        %2273 = vmatpush1.msra.mxu0 0.0
        %2274 = vmatprep.subr.mxu0 0.0
        %2275 = vmatpush1.msra.mxu0 0.0
        %2276 = vmatprep.subr.mxu0 0.0
        %2277 = vmatpush1.msra.mxu0 0.0
        %2278 = vmatprep.subr.mxu0 0.0
        %2279 = vmatpush1.msra.mxu0 0.0
        %2280 = vmatprep.subr.mxu0 0.0
        %2281 = vmatpush1.msra.mxu0 0.0
        %2282 = vmatprep.subr.mxu0 0.0
        %2283 = vmatpush1.msra.mxu0 0.0
        %2284 = vmatprep.subr.mxu0 0.0
        %2285 = vmatpush1.msra.mxu0 0.0
        %2286 = vmatprep.subr.mxu0 0.0
        %2287 = vmatpush1.msra.mxu0 0.0
        %2288 = vmatprep.subr.mxu0 0.0
        %2289 = vmatpush1.msra.mxu0 0.0
        %2290 = vmatprep.subr.mxu0 0.0
        %2291 = vmatpush1.msra.mxu0 0.0
        %2292 = vmatprep.subr.mxu0 0.0
        %2293 = vmatpush1.msra.mxu0 0.0
        %2294 = vmatprep.subr.mxu0 0.0
        %2295 = vmatpush1.msra.mxu0 0.0
        %2296 = vmatprep.subr.mxu0 0.0
        %2297 = vmatpush1.msra.mxu0 0.0
        %2298 = vmatprep.subr.mxu0 0.0
        %2299 = vmatpush1.msra.mxu0 0.0
        %2300 = vmatprep.subr.mxu0 0.0
        %2301 = vmatpush1.msra.mxu0 0.0
        %2302 = vmatprep.mubr.f32.mxu0 0.0
        %2303 = vmatmul.mubr.f32.gmra.mrb[0].mxu0 %v2233
        %v2304 = vpop.f32.mrb[0].mxu0
        %v2305 = vadd.f32 %v2230, %v2304
        %v2306 = vpop.f32.mrb[0].mxu0
        %2307 = vmatprep.mubr.f32.mxu0 0.0
        %2308 = vmatmul.mubr.f32.gmra.mrb[0].mxu0 %v2236
        %v2309 = vpop.f32.mrb[0].mxu0
        %v2310 = vadd.f32 %v2230, %v2309
        %v2311 = vpop.f32.mrb[0].mxu0
        %2312 = vdwg.mxu0
        %v2313 = vmax.f32 %v2305, 0.0
        %v2314 = vmax.f32 %v2310, 0.0
        %v2315 = vld [vmem:[%s539] sm:$0xff]
        %v2316 = vld [vmem:[%s539 + $0x8] sm:$0xff]
        %v2317 = vld [vmem:[%s539 + $0x10] sm:$0xff]
        %v2318 = vld [vmem:[%s539 + $0x18] sm:$0xff]
        %v2319 = vld [vmem:[%s539 + $0x20] sm:$0xff]
        %v2320 = vld [vmem:[%s539 + $0x28] sm:$0xff]
        %v2321 = vld [vmem:[%s539 + $0x30] sm:$0xff]
        %v2322 = vld [vmem:[%s539 + $0x38] sm:$0xff]
        %v2323 = vlaneseq
        %v2324 = vshrl.u32 %v2323, 7
        %v2325 = vsub.s32 3, %v2324
        %v2326 = vrot.slane %v646, %v2325
        %vm2327 = vcmask 523264
        %v2329 = vsel %vm2327, %v2313, 0
        %v2332 = vsel %vm2327, %v2314, 0
        %2334 = vmatprep.subr.mxu0 0.0
        %2335 = vmatpush1.msra.mxu0 %v2315
        %2336 = vmatprep.subr.mxu0 0.0
        %2337 = vmatpush1.msra.mxu0 %v2316
        %2338 = vmatprep.subr.mxu0 0.0
        %2339 = vmatpush1.msra.mxu0 %v2317
        %2340 = vmatprep.subr.mxu0 0.0
        %2341 = vmatpush1.msra.mxu0 %v2318
        %2342 = vmatprep.subr.mxu0 0.0
        %2343 = vmatpush1.msra.mxu0 %v2319
        %2344 = vmatprep.subr.mxu0 0.0
        %2345 = vmatpush1.msra.mxu0 %v2320
        %2346 = vmatprep.subr.mxu0 0.0
        %2347 = vmatpush1.msra.mxu0 %v2321
        %2348 = vmatprep.subr.mxu0 0.0
        %2349 = vmatpush1.msra.mxu0 %v2322
        %2350 = vmatprep.subr.mxu0 0.0
        %2351 = vmatpush1.msra.mxu0 0.0
        %2352 = vmatprep.subr.mxu0 0.0
        %2353 = vmatpush1.msra.mxu0 0.0
        %2354 = vmatprep.subr.mxu0 0.0
        %2355 = vmatpush1.msra.mxu0 0.0
        %2356 = vmatprep.subr.mxu0 0.0
        %2357 = vmatpush1.msra.mxu0 0.0
        %2358 = vmatprep.subr.mxu0 0.0
        %2359 = vmatpush1.msra.mxu0 0.0
        %2360 = vmatprep.subr.mxu0 0.0
        %2361 = vmatpush1.msra.mxu0 0.0
        %2362 = vmatprep.subr.mxu0 0.0
        %2363 = vmatpush1.msra.mxu0 0.0
        %2364 = vmatprep.subr.mxu0 0.0
        %2365 = vmatpush1.msra.mxu0 0.0
        %2366 = vmatprep.subr.mxu0 0.0
        %2367 = vmatpush1.msra.mxu0 0.0
        %2368 = vmatprep.subr.mxu0 0.0
        %2369 = vmatpush1.msra.mxu0 0.0
        %2370 = vmatprep.subr.mxu0 0.0
        %2371 = vmatpush1.msra.mxu0 0.0
        %2372 = vmatprep.subr.mxu0 0.0
        %2373 = vmatpush1.msra.mxu0 0.0
        %2374 = vmatprep.subr.mxu0 0.0
        %2375 = vmatpush1.msra.mxu0 0.0
        %2376 = vmatprep.subr.mxu0 0.0
        %2377 = vmatpush1.msra.mxu0 0.0
        %2378 = vmatprep.subr.mxu0 0.0
        %2379 = vmatpush1.msra.mxu0 0.0
        %2380 = vmatprep.subr.mxu0 0.0
        %2381 = vmatpush1.msra.mxu0 0.0
        %2382 = vmatprep.subr.mxu0 0.0
        %2383 = vmatpush1.msra.mxu0 0.0
        %2384 = vmatprep.subr.mxu0 0.0
        %2385 = vmatpush1.msra.mxu0 0.0
        %2386 = vmatprep.subr.mxu0 0.0
        %2387 = vmatpush1.msra.mxu0 0.0
        %2388 = vmatprep.subr.mxu0 0.0
        %2389 = vmatpush1.msra.mxu0 0.0
        %2390 = vmatprep.subr.mxu0 0.0
        %2391 = vmatpush1.msra.mxu0 0.0
        %2392 = vmatprep.subr.mxu0 0.0
        %2393 = vmatpush1.msra.mxu0 0.0
        %2394 = vmatprep.subr.mxu0 0.0
        %2395 = vmatpush1.msra.mxu0 0.0
        %2396 = vmatprep.subr.mxu0 0.0
        %2397 = vmatpush1.msra.mxu0 0.0
        %2398 = vmatprep.mubr.f32.mxu0 0.0
        %2399 = vmatmul.mubr.f32.gmra.mrb[0].mxu0 %v2329
        %v2400 = vpop.f32.mrb[0].mxu0
        %v2401 = vadd.f32 %v2326, %v2400
        %v2402 = vpop.f32.mrb[0].mxu0
        %2403 = vmatprep.mubr.f32.mxu0 0.0
        %2404 = vmatmul.mubr.f32.gmra.mrb[0].mxu0 %v2332
        %v2405 = vpop.f32.mrb[0].mxu0
        %v2406 = vadd.f32 %v2326, %v2405
        %v2407 = vpop.f32.mrb[0].mxu0
        %2408 = vdwg.mxu0
        %v2409 = vadd.f32 %v2219, %v2401
        %v2410 = vadd.f32 %v2220, %v2406
        %v2411 = vsel %vm658, %v2409, 0.0
        %2412 = vadd.xlane.f32.xlu0 %v2411
        %v2413 = vpop.xlane.xlu0 %2412
        %v2414 = vsel %vm658, %v2410, 0.0
        %2415 = vadd.xlane.f32.xlu0 %v2414
        %v2416 = vpop.xlane.xlu0 %2415
        %v2417 = vmul.f32 %v2413, %v2188
        %v2418 = vmul.f32 %v2416, %v2188
        %v2419 = vsub.f32 %v2409, %v2417
        %v2420 = vsub.f32 %v2410, %v2418
        %v2421 = vmul.f32 %v2419, %v2419
        %v2422 = vmul.f32 %v2420, %v2420
        %v2423 = vsel %vm658, %v2421, 0.0
        %2424 = vadd.xlane.f32.xlu0 %v2423
        %v2425 = vpop.xlane.xlu0 %2424
        %v2426 = vsel %vm658, %v2422, 0.0
        %2427 = vadd.xlane.f32.xlu0 %v2426
        %v2428 = vpop.xlane.xlu0 %2427
        %v2429 = vmul.f32 %v2425, %v2188
        %v2430 = vmul.f32 %v2428, %v2188
        %v2431 = vadd.f32 %v2429, 1e-05
        %v2432 = vadd.f32 %v2430, 1e-05
        %v2433 = vrsqrt.pop %v2431
        %v2434 = vrsqrt.pop %v2432
        %v2435 = vmul.f32 %v2419, %v2433
        %v2436 = vmul.f32 %v2420, %v2434
        %v2437 = vlaneseq
        %v2438 = vshrl.u32 %v2437, 7
        %v2439 = vsub.s32 4, %v2438
        %v2440 = vrot.slane %v646, %v2439
        %v2441 = vmul.f32 %v2435, %v2440
        %v2442 = vmul.f32 %v2436, %v2440
        %v2443 = vlaneseq
        %v2444 = vshrl.u32 %v2443, 7
        %v2445 = vsub.s32 5, %v2444
        %v2446 = vrot.slane %v646, %v2445
        %v2447 = vadd.f32 %v2441, %v2446
        %v2448 = vadd.f32 %v2442, %v2446
        %2449 = vst.msk [vmem:[#allocation2] sm:$0xff] %vm658, %v2447
        %2450 = vst.msk [vmem:[#allocation2 + $0x8] sm:$0xff] %vm658, %v2448
        %p2451 = scmp.eq.s32.totalorder %s29, 1
        // Predicated region
        $region73: #{transformer_forward.1} parent=67 // pred_check
          %p2452 = pneg %p2451
        $region74: #{transformer_forward.1} parent=67 // pred_check_branch
          %2454 = sbr.rel (%p2452) target = $region76
        $region75: #{transformer_forward.1} parent=67 // pred_region
          %v2455 = vld [vmem:[#allocation2] sm:$0xff]
          %v2456 = vld [vmem:[#allocation2 + $0x8] sm:$0xff]
          %v2457 = vsel %vm658, %v2455, 0.0
          %v2458 = vrot.slane %v2457, 4
          %v2459 = vadd.f32 %v2457, %v2458
          %v2460 = vrot.slane %v2459, 2
          %v2461 = vadd.f32 %v2459, %v2460
          %v2462 = vrot.slane %v2461, 1
          %v2463 = vadd.f32 %v2461, %v2462
          %v2464 = vsel %vm658, %v2456, 0.0
          %v2465 = vrot.slane %v2464, 4
          %v2466 = vadd.f32 %v2464, %v2465
          %v2467 = vrot.slane %v2466, 2
          %v2468 = vadd.f32 %v2466, %v2467
          %v2469 = vrot.slane %v2468, 1
          %v2470 = vadd.f32 %v2468, %v2469
          %v2471 = vrcp.pop 8.0
          %v2472 = vmul.f32 %v2463, %v2471
          %v2473 = vmul.f32 %v2470, %v2471
          %v2474 = vld [vmem:[%s10] sm:$0xff]
          %v2475 = vld [vmem:[%s10 + $0x8] sm:$0xff]
          %v2476 = vld [vmem:[%s10 + $0x10] sm:$0xff]
          %v2477 = vld [vmem:[%s10 + $0x18] sm:$0xff]
          %v2478 = vld [vmem:[%s11] sm:$0x1]
          %v2480 = vlaneseq
          %v2481 = vshrl.u32 %v2480, 7
          %v2482 = vsub.s32 0, %v2481
          %v2483 = vrot.slane %v2478, %v2482
          %vm2487 = vcmask 1041409
          %v2488 = vsel %vm2487, %v2473, %v2472
          %v2489 = vsel %vm658, %v2488, 0
          %2491 = vmatprep.subr.mxu0 0.0
          %2492 = vmatpush1.msra.mxu0 %v2474
          %2493 = vmatprep.subr.mxu0 0.0
          %2494 = vmatpush1.msra.mxu0 %v2475
          %2495 = vmatprep.subr.mxu0 0.0
          %2496 = vmatpush1.msra.mxu0 %v2476
          %2497 = vmatprep.subr.mxu0 0.0
          %2498 = vmatpush1.msra.mxu0 %v2477
          %2499 = vmatprep.subr.mxu0 0.0
          %2500 = vmatpush1.msra.mxu0 0.0
          %2501 = vmatprep.subr.mxu0 0.0
          %2502 = vmatpush1.msra.mxu0 0.0
          %2503 = vmatprep.subr.mxu0 0.0
          %2504 = vmatpush1.msra.mxu0 0.0
          %2505 = vmatprep.subr.mxu0 0.0
          %2506 = vmatpush1.msra.mxu0 0.0
          %2507 = vmatprep.subr.mxu0 0.0
          %2508 = vmatpush1.msra.mxu0 0.0
          %2509 = vmatprep.subr.mxu0 0.0
          %2510 = vmatpush1.msra.mxu0 0.0
          %2511 = vmatprep.subr.mxu0 0.0
          %2512 = vmatpush1.msra.mxu0 0.0
          %2513 = vmatprep.subr.mxu0 0.0
          %2514 = vmatpush1.msra.mxu0 0.0
          %2515 = vmatprep.subr.mxu0 0.0
          %2516 = vmatpush1.msra.mxu0 0.0
          %2517 = vmatprep.subr.mxu0 0.0
          %2518 = vmatpush1.msra.mxu0 0.0
          %2519 = vmatprep.subr.mxu0 0.0
          %2520 = vmatpush1.msra.mxu0 0.0
          %2521 = vmatprep.subr.mxu0 0.0
          %2522 = vmatpush1.msra.mxu0 0.0
          %2523 = vmatprep.subr.mxu0 0.0
          %2524 = vmatpush1.msra.mxu0 0.0
          %2525 = vmatprep.subr.mxu0 0.0
          %2526 = vmatpush1.msra.mxu0 0.0
          %2527 = vmatprep.subr.mxu0 0.0
          %2528 = vmatpush1.msra.mxu0 0.0
          %2529 = vmatprep.subr.mxu0 0.0
          %2530 = vmatpush1.msra.mxu0 0.0
          %2531 = vmatprep.subr.mxu0 0.0
          %2532 = vmatpush1.msra.mxu0 0.0
          %2533 = vmatprep.subr.mxu0 0.0
          %2534 = vmatpush1.msra.mxu0 0.0
          %2535 = vmatprep.subr.mxu0 0.0
          %2536 = vmatpush1.msra.mxu0 0.0
          %2537 = vmatprep.subr.mxu0 0.0
          %2538 = vmatpush1.msra.mxu0 0.0
          %2539 = vmatprep.subr.mxu0 0.0
          %2540 = vmatpush1.msra.mxu0 0.0
          %2541 = vmatprep.subr.mxu0 0.0
          %2542 = vmatpush1.msra.mxu0 0.0
          %2543 = vmatprep.subr.mxu0 0.0
          %2544 = vmatpush1.msra.mxu0 0.0
          %2545 = vmatprep.subr.mxu0 0.0
          %2546 = vmatpush1.msra.mxu0 0.0
          %2547 = vmatprep.subr.mxu0 0.0
          %2548 = vmatpush1.msra.mxu0 0.0
          %2549 = vmatprep.subr.mxu0 0.0
          %2550 = vmatpush1.msra.mxu0 0.0
          %2551 = vmatprep.subr.mxu0 0.0
          %2552 = vmatpush1.msra.mxu0 0.0
          %2553 = vmatprep.subr.mxu0 0.0
          %2554 = vmatpush1.msra.mxu0 0.0
          %2555 = vmatprep.mubr.f32.mxu0 0.0
          %2556 = vmatmul.mubr.f32.gmra.mrb[0].mxu0 %v2489
          %v2557 = vpop.f32.mrb[0].mxu0
          %v2558 = vadd.f32 %v2483, %v2557
          %v2559 = vpop.f32.mrb[0].mxu0
          %2560 = vdwg.mxu0
          %vm2561 = vcmask 33792
          %2562 = vst.msk [vmem:[#allocation3] sm:$0x3] %vm2561, %v2558
        $region76: #{transformer_forward.1} parent=67 // pred_fallthru
          _
        // Predicated region
        $region77: #{transformer_forward.1} parent=67 // pred_check
          %p2563 = pneg %p346
        $region78: #{transformer_forward.1} parent=67 // pred_check_branch
          %2565 = sbr.rel (%p2563) target = $region80
        $region79: #{transformer_forward.1} parent=67 // pred_region
          %s2567 = ssub.s32 32, 32
          %2568 = vsyncadd [#allocation4], %s2567
          %s2569 = smul.addr %s28, 32
          %s2570 = scalar_lea.hbm %s12, %s2569
          %s2572 = sshll.u32 [#allocation3], 4
          %s2573 = int_to_ptr.vmem [resolvable:$true] %s2572
          %2575 = dma.vmem_to_hbm [thread:$0]  %s2573, 32, %s2570, [#allocation4]
        $region80: #{transformer_forward.1} parent=67 // pred_fallthru
          _
        // Predicated region
        $region81: #{transformer_forward.1} parent=67 // pred_check
          %p2576 = pneg %p346
        $region82: #{transformer_forward.1} parent=67 // pred_check_branch
          %2578 = sbr.rel (%p2576) target = $region84
        $region83: #{transformer_forward.1} parent=67 // pred_region
          %2579 = dma.done [#allocation4], 32
        $region84: #{transformer_forward.1} parent=67 // pred_fallthru
          _
      $region68: #{transformer_forward.1} parent=5 // pred_fallthru
        _
      %p2580 = scmp.le.s32.totalorder 2, %s19
      // Predicated region
      $region85: #{transformer_forward.1} parent=5 // pred_check
        %p2581 = pneg %p2580
      $region86: #{transformer_forward.1} parent=5 // pred_check_branch
        %2583 = sbr.rel (%p2581) target = $region88
      $region87: #{transformer_forward.1} parent=5 // pred_region
        %s2584 = ssub.s32 %s19, 2
      $region88: #{transformer_forward.1} parent=5 // pred_fallthru
        _
    $region6: #{transformer_forward.1} parent=1 // loop_footer
      %s23 = sadd.s32 1, %s19
    $region7: #{transformer_forward.1} parent=1 // loop_footer_branch
      %18 = sbr.rel target = $region3
    $region8: #{transformer_forward.1} parent=1 // loop_exit
      _
    %2585 = vsyncpa [#allocation4], 1
    %s2586 = scalar_lea.sflag [#allocation4], 1
    %2587 = vsyncpa %s2586, 1

</llo_original>
